<compile_context>
chip_gen: v6e
topology: v6e:2x2x1
jax: 0.10.0
libtpu: 0.0.40
codegen_flags: <defaults>
</compile_context>

<pallas_src>
import functools

import jax
import jax.numpy as jnp
from jax.experimental import pallas as pl
from jax.experimental.pallas import tpu as pltpu

INPUT_SIZE = 1024      # per-branch size; raw input is 2 * INPUT_SIZE
H1 = 512
H2 = 256
NUM_CLASSES = 2
OUT_PAD = 128          # lane-dense padded output width
BN_EPS = 1e-5


def _round_up(n, m):
    return ((n + m - 1) // m) * m


def _mlp_kernel(x_ref, w1_ref, b1_ref, w2_ref, b2_ref, w3_ref, b3_ref, o_ref):
    x = x_ref[...]                                        # (TB, 2*INPUT_SIZE) f32

    # x.view(B, 2, 1024).mean(dim=1)
    h0 = 0.5 * (x[:, :INPUT_SIZE] + x[:, INPUT_SIZE:])    # (TB, 1024) f32

    # fc1 with BN1 + bias pre-folded into (w1, b1) -> relu
    h1 = jnp.dot(h0.astype(jnp.bfloat16), w1_ref[...],
                 preferred_element_type=jnp.float32)      # (TB, H1) f32
    h1 = jnp.maximum(h1 + b1_ref[...], 0.0)
    # TODO(synk): Dropout(p=0.3) is identity in eval mode; training-mode mask
    # (pltpu.prng_random_bits) not implemented here.

    # fc2 with BN2 + bias pre-folded -> relu
    h2 = jnp.dot(h1.astype(jnp.bfloat16), w2_ref[...],
                 preferred_element_type=jnp.float32)      # (TB, H2) f32
    h2 = jnp.maximum(h2 + b2_ref[...], 0.0)

    # fc3 (padded to OUT_PAD lanes) -> masked logsoftmax(dim=1)
    logits = jnp.dot(h2.astype(jnp.bfloat16), w3_ref[...],
                     preferred_element_type=jnp.float32)  # (TB, OUT_PAD) f32
    logits = logits + b3_ref[...]
    lane = jax.lax.broadcasted_iota(jnp.int32, logits.shape, 1)
    logits = jnp.where(lane < NUM_CLASSES, logits, -1e30)
    m = jnp.max(logits, axis=1, keepdims=True)
    lse = jnp.log(jnp.sum(jnp.exp(logits - m), axis=1, keepdims=True)) + m
    o_ref[...] = logits - lse


@jax.jit
def mlp_forward(x, params):
    """x: (B, 2*INPUT_SIZE) float32 -> (B, NUM_CLASSES) log-probabilities."""
    (w1, b1, g1, be1, rm1, rv1,
     w2, b2, g2, be2, rm2, rv2,
     w3, b3) = params

    # Fold eval-mode BatchNorm1d + linear bias into the weights (plain-JAX glue).
    s1 = g1 / jnp.sqrt(rv1 + BN_EPS)
    t1 = be1 - rm1 * s1
    s2 = g2 / jnp.sqrt(rv2 + BN_EPS)
    t2 = be2 - rm2 * s2

    w1f = (w1 * s1[None, :]).astype(jnp.bfloat16)         # (1024, 512) bf16
    b1f = (b1 * s1 + t1).reshape(1, H1)                   # (1, 512)    f32
    w2f = (w2 * s2[None, :]).astype(jnp.bfloat16)         # (512, 256)  bf16
    b2f = (b2 * s2 + t2).reshape(1, H2)                   # (1, 256)    f32

    # Pad fc3 to a lane-dense 128-wide output.
    w3p = jnp.zeros((H2, OUT_PAD), jnp.float32).at[:, :NUM_CLASSES].set(w3)
    w3p = w3p.astype(jnp.bfloat16)                        # (256, 128)  bf16
    b3p = jnp.zeros((1, OUT_PAD), jnp.float32).at[0, :NUM_CLASSES].set(b3)

    B = x.shape[0]
    TB = 512 if B >= 512 else _round_up(B, 8)             # batch tile
    Bp = _round_up(B, TB)
    if Bp > B:
        x = jnp.pad(x, ((0, Bp - B), (0, 0)))

    n_blocks = Bp // TB

    weight_bytes = (w1f.size + w2f.size + w3p.size) * 2 \
                 + (b1f.size + b2f.size + b3p.size) * 4
    cost = pl.CostEstimate(
        flops=2 * Bp * (INPUT_SIZE * H1 + H1 * H2 + H2 * OUT_PAD),
        transcendentals=Bp * (OUT_PAD + 1),
        bytes_accessed=weight_bytes + Bp * 2 * INPUT_SIZE * 4 + Bp * OUT_PAD * 4,
    )

    out = pl.pallas_call(
        _mlp_kernel,
        out_shape=jax.ShapeDtypeStruct((Bp, OUT_PAD), jnp.float32),
        grid=(n_blocks,),
        in_specs=[
            pl.BlockSpec((TB, 2 * INPUT_SIZE), lambda i: (i, 0)),   # x tile
            pl.BlockSpec((INPUT_SIZE, H1),     lambda i: (0, 0)),   # w1 (resident)
            pl.BlockSpec((1, H1),              lambda i: (0, 0)),   # b1
            pl.BlockSpec((H1, H2),             lambda i: (0, 0)),   # w2
            pl.BlockSpec((1, H2),              lambda i: (0, 0)),   # b2
            pl.BlockSpec((H2, OUT_PAD),        lambda i: (0, 0)),   # w3 (padded)
            pl.BlockSpec((1, OUT_PAD),         lambda i: (0, 0)),   # b3 (padded)
        ],
        out_specs=pl.BlockSpec((TB, OUT_PAD), lambda i: (i, 0)),
        compiler_params=pltpu.CompilerParams(
            dimension_semantics=("parallel",),
            vmem_limit_bytes=32 << 20,
        ),
        cost_estimate=cost,
    )(x, w1f, b1f, w2f, b2f, w3p, b3p)

    return out[:B, :NUM_CLASSES]


def _mlp_reference(x, params):
    """Pure-JAX f32 reference for correctness checking."""
    (w1, b1, g1, be1, rm1, rv1,
     w2, b2, g2, be2, rm2, rv2,
     w3, b3) = params
    h = 0.5 * (x[:, :INPUT_SIZE] + x[:, INPUT_SIZE:])
    h = h @ w1 + b1
    h = (h - rm1) / jnp.sqrt(rv1 + BN_EPS) * g1 + be1
    h = jnp.maximum(h, 0.0)
    h = h @ w2 + b2
    h = (h - rm2) / jnp.sqrt(rv2 + BN_EPS) * g2 + be2
    h = jnp.maximum(h, 0.0)
    logits = h @ w3 + b3
    return jax.nn.log_softmax(logits, axis=1)


def init_params(key):
    ks = jax.random.split(key, 6)
    w1 = jax.random.normal(ks[0], (INPUT_SIZE, H1), jnp.float32) * 0.02
    b1 = jax.random.normal(ks[1], (H1,), jnp.float32) * 0.02
    w2 = jax.random.normal(ks[2], (H1, H2), jnp.float32) * 0.02
    b2 = jax.random.normal(ks[3], (H2,), jnp.float32) * 0.02
    w3 = jax.random.normal(ks[4], (H2, NUM_CLASSES), jnp.float32) * 0.02
    b3 = jax.random.normal(ks[5], (NUM_CLASSES,), jnp.float32) * 0.02
    # BatchNorm1d defaults: gamma=1, beta=0, running_mean=0, running_var=1
    g1 = jnp.ones((H1,), jnp.float32); be1 = jnp.zeros((H1,), jnp.float32)
    rm1 = jnp.zeros((H1,), jnp.float32); rv1 = jnp.ones((H1,), jnp.float32)
    g2 = jnp.ones((H2,), jnp.float32); be2 = jnp.zeros((H2,), jnp.float32)
    rm2 = jnp.zeros((H2,), jnp.float32); rv2 = jnp.ones((H2,), jnp.float32)
    return (w1, b1, g1, be1, rm1, rv1,
            w2, b2, g2, be2, rm2, rv2,
            w3, b3)


if __name__ == "__main__":
    key = jax.random.PRNGKey(0)
    kx, kp = jax.random.split(key)
    B = 8
    x = jax.random.normal(kx, (B, 2 * INPUT_SIZE), jnp.float32)
    params = init_params(kp)

    out = mlp_forward(x, params)
    out = jax.block_until_ready(out)

    # sanity: shape, log-softmax rows sum (in prob space) to ~1, matches f32 ref
    assert out.shape == (B, NUM_CLASSES)
    assert jnp.allclose(jnp.sum(jnp.exp(out), axis=1), 1.0, atol=1e-4)
    ref = _mlp_reference(x, params)
    assert jnp.allclose(out, ref, atol=5e-2), float(jnp.max(jnp.abs(out - ref)))
    print("KERNEL_OK")
</pallas_src>

<mosaic_0001>
module attributes {stable_mosaic.version = 11 : i64} {
  func.func @_mlp_kernel(%arg0: i32, %arg1: memref<8x2048xf32, #tpu.memory_space<vmem>>, %arg2: memref<1024x512xbf16, #tpu.memory_space<vmem>>, %arg3: memref<1x512xf32, #tpu.memory_space<vmem>>, %arg4: memref<512x256xbf16, #tpu.memory_space<vmem>>, %arg5: memref<1x256xf32, #tpu.memory_space<vmem>>, %arg6: memref<256x128xbf16, #tpu.memory_space<vmem>>, %arg7: memref<1x128xf32, #tpu.memory_space<vmem>>, %arg8: memref<8x128xf32, #tpu.memory_space<vmem>>) attributes {dimension_semantics = [#tpu.dimension_semantics<parallel>], iteration_bounds = array<i64: 1>, scalar_prefetch = 0 : i64, scratch_operands = 0 : i64, tpu.core_type = #tpu.core_type<tc>, window_params = [{transform_indices = @transform_0, window_bounds = array<i64: 8, 2048>}, {pipeline_mode = #tpu.pipeline_mode<synchronous>, transform_indices = @transform_1, window_bounds = array<i64: 1024, 512>}, {pipeline_mode = #tpu.pipeline_mode<synchronous>, transform_indices = @transform_2, window_bounds = array<i64: 1, 512>}, {pipeline_mode = #tpu.pipeline_mode<synchronous>, transform_indices = @transform_3, window_bounds = array<i64: 512, 256>}, {pipeline_mode = #tpu.pipeline_mode<synchronous>, transform_indices = @transform_4, window_bounds = array<i64: 1, 256>}, {pipeline_mode = #tpu.pipeline_mode<synchronous>, transform_indices = @transform_5, window_bounds = array<i64: 256, 128>}, {pipeline_mode = #tpu.pipeline_mode<synchronous>, transform_indices = @transform_6, window_bounds = array<i64: 1, 128>}, {transform_indices = @transform_7, window_bounds = array<i64: 8, 128>}]} {
    %c0 = arith.constant 0 : index
    %c0_0 = arith.constant 0 : index
    %0 = vector.load %arg1[%c0, %c0_0] : memref<8x2048xf32, #tpu.memory_space<vmem>>, vector<8x2048xf32>
    %1 = vector.extract_strided_slice %0 {offsets = [0, 0], sizes = [8, 1024], strides = [1, 1]} : vector<8x2048xf32> to vector<8x1024xf32>
    %2 = vector.extract_strided_slice %0 {offsets = [0, 1024], sizes = [8, 1024], strides = [1, 1]} : vector<8x2048xf32> to vector<8x1024xf32>
    %3 = arith.addf %1, %2 : vector<8x1024xf32>
    %cst = arith.constant 5.000000e-01 : f32
    %4 = vector.broadcast %cst : f32 to vector<8x1024xf32>
    %5 = arith.mulf %4, %3 : vector<8x1024xf32>
    %6 = arith.truncf %5 : vector<8x1024xf32> to vector<8x1024xbf16>
    %c0_1 = arith.constant 0 : index
    %c0_2 = arith.constant 0 : index
    %7 = vector.load %arg2[%c0_1, %c0_2] : memref<1024x512xbf16, #tpu.memory_space<vmem>>, vector<1024x512xbf16>
    %cst_3 = arith.constant dense<0.000000e+00> : vector<8x512xf32>
    %8 = tpu.matmul %6, %7, %cst_3 {dimension_numbers = #tpu.dot_dimension_numbers<[1], [0], [0], [1], [0, 0, 1, 1], [], []>} : vector<8x1024xbf16>, vector<1024x512xbf16>, vector<8x512xf32> -> vector<8x512xf32>
    %c0_4 = arith.constant 0 : index
    %c0_5 = arith.constant 0 : index
    %9 = vector.load %arg3[%c0_4, %c0_5] : memref<1x512xf32, #tpu.memory_space<vmem>>, vector<1x512xf32>
    %10 = vector.broadcast %9 : vector<1x512xf32> to vector<8x512xf32>
    %11 = arith.addf %8, %10 : vector<8x512xf32>
    %cst_6 = arith.constant 0.000000e+00 : f32
    %12 = vector.broadcast %cst_6 : f32 to vector<8x512xf32>
    %13 = arith.maximumf %11, %12 : vector<8x512xf32>
    %14 = arith.truncf %13 : vector<8x512xf32> to vector<8x512xbf16>
    %c0_7 = arith.constant 0 : index
    %c0_8 = arith.constant 0 : index
    %15 = vector.load %arg4[%c0_7, %c0_8] : memref<512x256xbf16, #tpu.memory_space<vmem>>, vector<512x256xbf16>
    %cst_9 = arith.constant dense<0.000000e+00> : vector<8x256xf32>
    %16 = tpu.matmul %14, %15, %cst_9 {dimension_numbers = #tpu.dot_dimension_numbers<[1], [0], [0], [1], [0, 0, 1, 1], [], []>} : vector<8x512xbf16>, vector<512x256xbf16>, vector<8x256xf32> -> vector<8x256xf32>
    %c0_10 = arith.constant 0 : index
    %c0_11 = arith.constant 0 : index
    %17 = vector.load %arg5[%c0_10, %c0_11] : memref<1x256xf32, #tpu.memory_space<vmem>>, vector<1x256xf32>
    %18 = vector.broadcast %17 : vector<1x256xf32> to vector<8x256xf32>
    %19 = arith.addf %16, %18 : vector<8x256xf32>
    %cst_12 = arith.constant 0.000000e+00 : f32
    %20 = vector.broadcast %cst_12 : f32 to vector<8x256xf32>
    %21 = arith.maximumf %19, %20 : vector<8x256xf32>
    %22 = arith.truncf %21 : vector<8x256xf32> to vector<8x256xbf16>
    %c0_13 = arith.constant 0 : index
    %c0_14 = arith.constant 0 : index
    %23 = vector.load %arg6[%c0_13, %c0_14] : memref<256x128xbf16, #tpu.memory_space<vmem>>, vector<256x128xbf16>
    %cst_15 = arith.constant dense<0.000000e+00> : vector<8x128xf32>
    %24 = tpu.matmul %22, %23, %cst_15 {dimension_numbers = #tpu.dot_dimension_numbers<[1], [0], [0], [1], [0, 0, 1, 1], [], []>} : vector<8x256xbf16>, vector<256x128xbf16>, vector<8x128xf32> -> vector<8x128xf32>
    %c0_16 = arith.constant 0 : index
    %c0_17 = arith.constant 0 : index
    %25 = vector.load %arg7[%c0_16, %c0_17] : memref<1x128xf32, #tpu.memory_space<vmem>>, vector<1x128xf32>
    %26 = vector.broadcast %25 : vector<1x128xf32> to vector<8x128xf32>
    %27 = arith.addf %24, %26 : vector<8x128xf32>
    %28 = tpu.iota {dimensions = array<i32: 1>} : vector<8x128xi32>
    %c2_i32 = arith.constant 2 : i32
    %29 = vector.broadcast %c2_i32 : i32 to vector<8x128xi32>
    %30 = arith.cmpi slt, %28, %29 : vector<8x128xi32>
    %cst_18 = arith.constant -1.000000e+30 : f32
    %31 = vector.broadcast %cst_18 : f32 to vector<8x128xf32>
    %32 = arith.select %30, %27, %31 : vector<8x128xi1>, vector<8x128xf32>
    %cst_19 = arith.constant dense<0xFF800000> : vector<8xf32>
    %33 = vector.multi_reduction <maximumf>, %32, %cst_19 [1] : vector<8x128xf32> to vector<8xf32>
    %34 = vector.shape_cast %33 : vector<8xf32> to vector<8x1xf32>
    %35 = vector.broadcast %34 : vector<8x1xf32> to vector<8x128xf32>
    %36 = arith.subf %32, %35 : vector<8x128xf32>
    %37 = math.exp %36 : vector<8x128xf32>
    %cst_20 = arith.constant dense<0.000000e+00> : vector<8xf32>
    %38 = vector.multi_reduction <add>, %37, %cst_20 [1] : vector<8x128xf32> to vector<8xf32>
    %39 = vector.shape_cast %38 : vector<8xf32> to vector<8x1xf32>
    %40 = math.log %39 : vector<8x1xf32>
    %41 = arith.addf %40, %34 : vector<8x1xf32>
    %42 = vector.broadcast %41 : vector<8x1xf32> to vector<8x128xf32>
    %43 = arith.subf %32, %42 : vector<8x128xf32>
    %c0_21 = arith.constant 0 : index
    %c0_22 = arith.constant 0 : index
    %44 = vector.load %arg8[%c0_21, %c0_22] : memref<8x128xf32, #tpu.memory_space<vmem>>, vector<8x128xf32>
    tpu.vector_store %arg8[%c0_21, %c0_22], %43 {strides = array<i32>} : memref<8x128xf32, #tpu.memory_space<vmem>>, vector<8x128xf32>,
    return
  }
  func.func @transform_0(%arg0: i32) -> (i32, i32) {
    %c0_i32 = arith.constant 0 : i32
    %c0_i32_0 = arith.constant 0 : i32
    return %arg0, %c0_i32 : i32, i32
  }
  func.func @transform_1(%arg0: i32) -> (i32, i32) {
    %c0_i32 = arith.constant 0 : i32
    %c0_i32_0 = arith.constant 0 : i32
    %c0_i32_1 = arith.constant 0 : i32
    return %c0_i32, %c0_i32_0 : i32, i32
  }
  func.func @transform_2(%arg0: i32) -> (i32, i32) {
    %c0_i32 = arith.constant 0 : i32
    %c0_i32_0 = arith.constant 0 : i32
    %c0_i32_1 = arith.constant 0 : i32
    return %c0_i32, %c0_i32_0 : i32, i32
  }
  func.func @transform_3(%arg0: i32) -> (i32, i32) {
    %c0_i32 = arith.constant 0 : i32
    %c0_i32_0 = arith.constant 0 : i32
    %c0_i32_1 = arith.constant 0 : i32
    return %c0_i32, %c0_i32_0 : i32, i32
  }
  func.func @transform_4(%arg0: i32) -> (i32, i32) {
    %c0_i32 = arith.constant 0 : i32
    %c0_i32_0 = arith.constant 0 : i32
    %c0_i32_1 = arith.constant 0 : i32
    return %c0_i32, %c0_i32_0 : i32, i32
  }
  func.func @transform_5(%arg0: i32) -> (i32, i32) {
    %c0_i32 = arith.constant 0 : i32
    %c0_i32_0 = arith.constant 0 : i32
    %c0_i32_1 = arith.constant 0 : i32
    return %c0_i32, %c0_i32_0 : i32, i32
  }
  func.func @transform_6(%arg0: i32) -> (i32, i32) {
    %c0_i32 = arith.constant 0 : i32
    %c0_i32_0 = arith.constant 0 : i32
    %c0_i32_1 = arith.constant 0 : i32
    return %c0_i32, %c0_i32_0 : i32, i32
  }
  func.func @transform_7(%arg0: i32) -> (i32, i32) {
    %c0_i32 = arith.constant 0 : i32
    %c0_i32_0 = arith.constant 0 : i32
    return %arg0, %c0_i32 : i32, i32
  }
}

</mosaic_0001>

<llo_original>
// kernel: mlp_forward.1
$region0: #{mlp_forward.1}
  #allocation0 [shape = 'u32[]', space=smem, size = 0x4, offset = 0x4, fixed_abs, tag = 'smem constant byte address 0x4 - core index']
  #allocation1 [shape = 'u32[144,128]{1,0:T(1,128)}', space=vmem, size = 0x12000, scoped, tag = 'internal scratch']
  %s0 = inlined_call_operand.vmem [shape: f32[8,2048], index: 0, kind: input, shape index: {}]
  %s1 = inlined_call_operand.vmem [shape: bf16[1024,512], index: 1, kind: input, shape index: {}]
  %s2 = inlined_call_operand.vmem [shape: f32[1,512], index: 2, kind: input, shape index: {}]
  %s3 = inlined_call_operand.vmem [shape: bf16[512,256], index: 3, kind: input, shape index: {}]
  %s4 = inlined_call_operand.vmem [shape: f32[1,256], index: 4, kind: input, shape index: {}]
  %s5 = inlined_call_operand.vmem [shape: bf16[256,128], index: 5, kind: input, shape index: {}]
  %s6 = inlined_call_operand.vmem [shape: f32[1,128], index: 6, kind: input, shape index: {}]
  %s7 = inlined_call_operand.vmem [shape: f32[8,128], index: 7, kind: output, shape index: {}]
  %s8 = sld [smem:[#allocation0]]
  $region38: #{mlp_forward.1} parent=0
    _
  %s10 = ssub.s32 1, %s8
  %s11 = scalar_select 0, %s10, %s8
  // Predicated region
  $region2: #{mlp_forward.1} parent=0 // pred_check
    _
  $region3: #{mlp_forward.1} parent=0 // pred_check_branch
    %13 = sbr.rel (0) target = $region5
  $region4: #{mlp_forward.1} parent=0 // pred_region
    _
  $region5: #{mlp_forward.1} parent=0 // pred_fallthru
    _
  // Predicated region
  $region6: #{mlp_forward.1} parent=0 // pred_check
    _
  $region7: #{mlp_forward.1} parent=0 // pred_check_branch
    %15 = sbr.rel (0) target = $region9
  $region8: #{mlp_forward.1} parent=0 // pred_region
    _
  $region9: #{mlp_forward.1} parent=0 // pred_fallthru
    _
  // Predicated region
  $region10: #{mlp_forward.1} parent=0 // pred_check
    _
  $region11: #{mlp_forward.1} parent=0 // pred_check_branch
    %17 = sbr.rel (0) target = $region13
  $region12: #{mlp_forward.1} parent=0 // pred_region
    _
  $region13: #{mlp_forward.1} parent=0 // pred_fallthru
    _
  // Predicated region
  $region14: #{mlp_forward.1} parent=0 // pred_check
    _
  $region15: #{mlp_forward.1} parent=0 // pred_check_branch
    %19 = sbr.rel (0) target = $region17
  $region16: #{mlp_forward.1} parent=0 // pred_region
    _
  $region17: #{mlp_forward.1} parent=0 // pred_fallthru
    _
  // Predicated region
  $region18: #{mlp_forward.1} parent=0 // pred_check
    _
  $region19: #{mlp_forward.1} parent=0 // pred_check_branch
    %21 = sbr.rel (0) target = $region21
  $region20: #{mlp_forward.1} parent=0 // pred_region
    _
  $region21: #{mlp_forward.1} parent=0 // pred_fallthru
    _
  // Predicated region
  $region22: #{mlp_forward.1} parent=0 // pred_check
    _
  $region23: #{mlp_forward.1} parent=0 // pred_check_branch
    %23 = sbr.rel (0) target = $region25
  $region24: #{mlp_forward.1} parent=0 // pred_region
    _
  $region25: #{mlp_forward.1} parent=0 // pred_fallthru
    _
  // Predicated region
  $region26: #{mlp_forward.1} parent=0 // pred_check
    _
  $region27: #{mlp_forward.1} parent=0 // pred_check_branch
    %25 = sbr.rel (0) target = $region29
  $region28: #{mlp_forward.1} parent=0 // pred_region
    _
  $region29: #{mlp_forward.1} parent=0 // pred_fallthru
    _
  %v27 = vld [vmem:[%s0] sm:$0xff]
  %v28 = vld [vmem:[%s0 + $0x8] sm:$0xff]
  %v29 = vld [vmem:[%s0 + $0x10] sm:$0xff]
  %v30 = vld [vmem:[%s0 + $0x18] sm:$0xff]
  %v31 = vld [vmem:[%s0 + $0x20] sm:$0xff]
  %v32 = vld [vmem:[%s0 + $0x28] sm:$0xff]
  %v33 = vld [vmem:[%s0 + $0x30] sm:$0xff]
  %v34 = vld [vmem:[%s0 + $0x38] sm:$0xff]
  %v35 = vld [vmem:[%s0 + $0x40] sm:$0xff]
  %v36 = vld [vmem:[%s0 + $0x48] sm:$0xff]
  %v37 = vld [vmem:[%s0 + $0x50] sm:$0xff]
  %v38 = vld [vmem:[%s0 + $0x58] sm:$0xff]
  %v39 = vld [vmem:[%s0 + $0x60] sm:$0xff]
  %v40 = vld [vmem:[%s0 + $0x68] sm:$0xff]
  %v41 = vld [vmem:[%s0 + $0x70] sm:$0xff]
  %v42 = vld [vmem:[%s0 + $0x78] sm:$0xff]
  %v43 = vadd.f32 %v27, %v35
  %v44 = vadd.f32 %v28, %v36
  %v45 = vadd.f32 %v29, %v37
  %v46 = vadd.f32 %v30, %v38
  %v47 = vadd.f32 %v31, %v39
  %v48 = vadd.f32 %v32, %v40
  %v49 = vadd.f32 %v33, %v41
  %v50 = vadd.f32 %v34, %v42
  %v51 = vmul.f32 %v43, 0.5
  %v52 = vmul.f32 %v44, 0.5
  %v53 = vmul.f32 %v45, 0.5
  %v54 = vmul.f32 %v46, 0.5
  %v55 = vmul.f32 %v47, 0.5
  %v56 = vmul.f32 %v48, 0.5
  %v57 = vmul.f32 %v49, 0.5
  %v58 = vmul.f32 %v50, 0.5
  %v59 = vpack.c.bf16 %v51, %v51
  %v60 = vpack.c.bf16 %v52, %v52
  %v61 = vpack.c.bf16 %v53, %v53
  %v62 = vpack.c.bf16 %v54, %v54
  %v63 = vpack.c.bf16 %v55, %v55
  %v64 = vpack.c.bf16 %v56, %v56
  %v65 = vpack.c.bf16 %v57, %v57
  %v66 = vpack.c.bf16 %v58, %v58
  %v67 = vld [vmem:[%s1] sm:$0xff]
  %v68 = vld [vmem:[%s1 + $0x8] sm:$0xff]
  %v69 = vld [vmem:[%s1 + $0x10] sm:$0xff]
  %v70 = vld [vmem:[%s1 + $0x18] sm:$0xff]
  %v71 = vld [vmem:[%s1 + $0x20] sm:$0xff]
  %v72 = vld [vmem:[%s1 + $0x28] sm:$0xff]
  %v73 = vld [vmem:[%s1 + $0x30] sm:$0xff]
  %v74 = vld [vmem:[%s1 + $0x38] sm:$0xff]
  %v75 = vld [vmem:[%s1 + $0x40] sm:$0xff]
  %v76 = vld [vmem:[%s1 + $0x48] sm:$0xff]
  %v77 = vld [vmem:[%s1 + $0x50] sm:$0xff]
  %v78 = vld [vmem:[%s1 + $0x58] sm:$0xff]
  %v79 = vld [vmem:[%s1 + $0x60] sm:$0xff]
  %v80 = vld [vmem:[%s1 + $0x68] sm:$0xff]
  %v81 = vld [vmem:[%s1 + $0x70] sm:$0xff]
  %v82 = vld [vmem:[%s1 + $0x78] sm:$0xff]
  %v83 = vld [vmem:[%s1 + $0x80] sm:$0xff]
  %v84 = vld [vmem:[%s1 + $0x88] sm:$0xff]
  %v85 = vld [vmem:[%s1 + $0x90] sm:$0xff]
  %v86 = vld [vmem:[%s1 + $0x98] sm:$0xff]
  %v87 = vld [vmem:[%s1 + $0xa0] sm:$0xff]
  %v88 = vld [vmem:[%s1 + $0xa8] sm:$0xff]
  %v89 = vld [vmem:[%s1 + $0xb0] sm:$0xff]
  %v90 = vld [vmem:[%s1 + $0xb8] sm:$0xff]
  %v91 = vld [vmem:[%s1 + $0xc0] sm:$0xff]
  %v92 = vld [vmem:[%s1 + $0xc8] sm:$0xff]
  %v93 = vld [vmem:[%s1 + $0xd0] sm:$0xff]
  %v94 = vld [vmem:[%s1 + $0xd8] sm:$0xff]
  %v95 = vld [vmem:[%s1 + $0xe0] sm:$0xff]
  %v96 = vld [vmem:[%s1 + $0xe8] sm:$0xff]
  %v97 = vld [vmem:[%s1 + $0xf0] sm:$0xff]
  %v98 = vld [vmem:[%s1 + $0xf8] sm:$0xff]
  %v99 = vld [vmem:[%s1 + $0x100] sm:$0xff]
  %v100 = vld [vmem:[%s1 + $0x108] sm:$0xff]
  %v101 = vld [vmem:[%s1 + $0x110] sm:$0xff]
  %v102 = vld [vmem:[%s1 + $0x118] sm:$0xff]
  %v103 = vld [vmem:[%s1 + $0x120] sm:$0xff]
  %v104 = vld [vmem:[%s1 + $0x128] sm:$0xff]
  %v105 = vld [vmem:[%s1 + $0x130] sm:$0xff]
  %v106 = vld [vmem:[%s1 + $0x138] sm:$0xff]
  %v107 = vld [vmem:[%s1 + $0x140] sm:$0xff]
  %v108 = vld [vmem:[%s1 + $0x148] sm:$0xff]
  %v109 = vld [vmem:[%s1 + $0x150] sm:$0xff]
  %v110 = vld [vmem:[%s1 + $0x158] sm:$0xff]
  %v111 = vld [vmem:[%s1 + $0x160] sm:$0xff]
  %v112 = vld [vmem:[%s1 + $0x168] sm:$0xff]
  %v113 = vld [vmem:[%s1 + $0x170] sm:$0xff]
  %v114 = vld [vmem:[%s1 + $0x178] sm:$0xff]
  %v115 = vld [vmem:[%s1 + $0x180] sm:$0xff]
  %v116 = vld [vmem:[%s1 + $0x188] sm:$0xff]
  %v117 = vld [vmem:[%s1 + $0x190] sm:$0xff]
  %v118 = vld [vmem:[%s1 + $0x198] sm:$0xff]
  %v119 = vld [vmem:[%s1 + $0x1a0] sm:$0xff]
  %v120 = vld [vmem:[%s1 + $0x1a8] sm:$0xff]
  %v121 = vld [vmem:[%s1 + $0x1b0] sm:$0xff]
  %v122 = vld [vmem:[%s1 + $0x1b8] sm:$0xff]
  %v123 = vld [vmem:[%s1 + $0x1c0] sm:$0xff]
  %v124 = vld [vmem:[%s1 + $0x1c8] sm:$0xff]
  %v125 = vld [vmem:[%s1 + $0x1d0] sm:$0xff]
  %v126 = vld [vmem:[%s1 + $0x1d8] sm:$0xff]
  %v127 = vld [vmem:[%s1 + $0x1e0] sm:$0xff]
  %v128 = vld [vmem:[%s1 + $0x1e8] sm:$0xff]
  %v129 = vld [vmem:[%s1 + $0x1f0] sm:$0xff]
  %v130 = vld [vmem:[%s1 + $0x1f8] sm:$0xff]
  %v131 = vld [vmem:[%s1 + $0x200] sm:$0xff]
  %v132 = vld [vmem:[%s1 + $0x208] sm:$0xff]
  %v133 = vld [vmem:[%s1 + $0x210] sm:$0xff]
  %v134 = vld [vmem:[%s1 + $0x218] sm:$0xff]
  %v135 = vld [vmem:[%s1 + $0x220] sm:$0xff]
  %v136 = vld [vmem:[%s1 + $0x228] sm:$0xff]
  %v137 = vld [vmem:[%s1 + $0x230] sm:$0xff]
  %v138 = vld [vmem:[%s1 + $0x238] sm:$0xff]
  %v139 = vld [vmem:[%s1 + $0x240] sm:$0xff]
  %v140 = vld [vmem:[%s1 + $0x248] sm:$0xff]
  %v141 = vld [vmem:[%s1 + $0x250] sm:$0xff]
  %v142 = vld [vmem:[%s1 + $0x258] sm:$0xff]
  %v143 = vld [vmem:[%s1 + $0x260] sm:$0xff]
  %v144 = vld [vmem:[%s1 + $0x268] sm:$0xff]
  %v145 = vld [vmem:[%s1 + $0x270] sm:$0xff]
  %v146 = vld [vmem:[%s1 + $0x278] sm:$0xff]
  %v147 = vld [vmem:[%s1 + $0x280] sm:$0xff]
  %v148 = vld [vmem:[%s1 + $0x288] sm:$0xff]
  %v149 = vld [vmem:[%s1 + $0x290] sm:$0xff]
  %v150 = vld [vmem:[%s1 + $0x298] sm:$0xff]
  %v151 = vld [vmem:[%s1 + $0x2a0] sm:$0xff]
  %v152 = vld [vmem:[%s1 + $0x2a8] sm:$0xff]
  %v153 = vld [vmem:[%s1 + $0x2b0] sm:$0xff]
  %v154 = vld [vmem:[%s1 + $0x2b8] sm:$0xff]
  %v155 = vld [vmem:[%s1 + $0x2c0] sm:$0xff]
  %v156 = vld [vmem:[%s1 + $0x2c8] sm:$0xff]
  %v157 = vld [vmem:[%s1 + $0x2d0] sm:$0xff]
  %v158 = vld [vmem:[%s1 + $0x2d8] sm:$0xff]
  %v159 = vld [vmem:[%s1 + $0x2e0] sm:$0xff]
  %v160 = vld [vmem:[%s1 + $0x2e8] sm:$0xff]
  %v161 = vld [vmem:[%s1 + $0x2f0] sm:$0xff]
  %v162 = vld [vmem:[%s1 + $0x2f8] sm:$0xff]
  %v163 = vld [vmem:[%s1 + $0x300] sm:$0xff]
  %v164 = vld [vmem:[%s1 + $0x308] sm:$0xff]
  %v165 = vld [vmem:[%s1 + $0x310] sm:$0xff]
  %v166 = vld [vmem:[%s1 + $0x318] sm:$0xff]
  %v167 = vld [vmem:[%s1 + $0x320] sm:$0xff]
  %v168 = vld [vmem:[%s1 + $0x328] sm:$0xff]
  %v169 = vld [vmem:[%s1 + $0x330] sm:$0xff]
  %v170 = vld [vmem:[%s1 + $0x338] sm:$0xff]
  %v171 = vld [vmem:[%s1 + $0x340] sm:$0xff]
  %v172 = vld [vmem:[%s1 + $0x348] sm:$0xff]
  %v173 = vld [vmem:[%s1 + $0x350] sm:$0xff]
  %v174 = vld [vmem:[%s1 + $0x358] sm:$0xff]
  %v175 = vld [vmem:[%s1 + $0x360] sm:$0xff]
  %v176 = vld [vmem:[%s1 + $0x368] sm:$0xff]
  %v177 = vld [vmem:[%s1 + $0x370] sm:$0xff]
  %v178 = vld [vmem:[%s1 + $0x378] sm:$0xff]
  %v179 = vld [vmem:[%s1 + $0x380] sm:$0xff]
  %v180 = vld [vmem:[%s1 + $0x388] sm:$0xff]
  %v181 = vld [vmem:[%s1 + $0x390] sm:$0xff]
  %v182 = vld [vmem:[%s1 + $0x398] sm:$0xff]
  %v183 = vld [vmem:[%s1 + $0x3a0] sm:$0xff]
  %v184 = vld [vmem:[%s1 + $0x3a8] sm:$0xff]
  %v185 = vld [vmem:[%s1 + $0x3b0] sm:$0xff]
  %v186 = vld [vmem:[%s1 + $0x3b8] sm:$0xff]
  %v187 = vld [vmem:[%s1 + $0x3c0] sm:$0xff]
  %v188 = vld [vmem:[%s1 + $0x3c8] sm:$0xff]
  %v189 = vld [vmem:[%s1 + $0x3d0] sm:$0xff]
  %v190 = vld [vmem:[%s1 + $0x3d8] sm:$0xff]
  %v191 = vld [vmem:[%s1 + $0x3e0] sm:$0xff]
  %v192 = vld [vmem:[%s1 + $0x3e8] sm:$0xff]
  %v193 = vld [vmem:[%s1 + $0x3f0] sm:$0xff]
  %v194 = vld [vmem:[%s1 + $0x3f8] sm:$0xff]
  %v195 = vld [vmem:[%s1 + $0x400] sm:$0xff]
  %v196 = vld [vmem:[%s1 + $0x408] sm:$0xff]
  %v197 = vld [vmem:[%s1 + $0x410] sm:$0xff]
  %v198 = vld [vmem:[%s1 + $0x418] sm:$0xff]
  %v199 = vld [vmem:[%s1 + $0x420] sm:$0xff]
  %v200 = vld [vmem:[%s1 + $0x428] sm:$0xff]
  %v201 = vld [vmem:[%s1 + $0x430] sm:$0xff]
  %v202 = vld [vmem:[%s1 + $0x438] sm:$0xff]
  %v203 = vld [vmem:[%s1 + $0x440] sm:$0xff]
  %v204 = vld [vmem:[%s1 + $0x448] sm:$0xff]
  %v205 = vld [vmem:[%s1 + $0x450] sm:$0xff]
  %v206 = vld [vmem:[%s1 + $0x458] sm:$0xff]
  %v207 = vld [vmem:[%s1 + $0x460] sm:$0xff]
  %v208 = vld [vmem:[%s1 + $0x468] sm:$0xff]
  %v209 = vld [vmem:[%s1 + $0x470] sm:$0xff]
  %v210 = vld [vmem:[%s1 + $0x478] sm:$0xff]
  %v211 = vld [vmem:[%s1 + $0x480] sm:$0xff]
  %v212 = vld [vmem:[%s1 + $0x488] sm:$0xff]
  %v213 = vld [vmem:[%s1 + $0x490] sm:$0xff]
  %v214 = vld [vmem:[%s1 + $0x498] sm:$0xff]
  %v215 = vld [vmem:[%s1 + $0x4a0] sm:$0xff]
  %v216 = vld [vmem:[%s1 + $0x4a8] sm:$0xff]
  %v217 = vld [vmem:[%s1 + $0x4b0] sm:$0xff]
  %v218 = vld [vmem:[%s1 + $0x4b8] sm:$0xff]
  %v219 = vld [vmem:[%s1 + $0x4c0] sm:$0xff]
  %v220 = vld [vmem:[%s1 + $0x4c8] sm:$0xff]
  %v221 = vld [vmem:[%s1 + $0x4d0] sm:$0xff]
  %v222 = vld [vmem:[%s1 + $0x4d8] sm:$0xff]
  %v223 = vld [vmem:[%s1 + $0x4e0] sm:$0xff]
  %v224 = vld [vmem:[%s1 + $0x4e8] sm:$0xff]
  %v225 = vld [vmem:[%s1 + $0x4f0] sm:$0xff]
  %v226 = vld [vmem:[%s1 + $0x4f8] sm:$0xff]
  %v227 = vld [vmem:[%s1 + $0x500] sm:$0xff]
  %v228 = vld [vmem:[%s1 + $0x508] sm:$0xff]
  %v229 = vld [vmem:[%s1 + $0x510] sm:$0xff]
  %v230 = vld [vmem:[%s1 + $0x518] sm:$0xff]
  %v231 = vld [vmem:[%s1 + $0x520] sm:$0xff]
  %v232 = vld [vmem:[%s1 + $0x528] sm:$0xff]
  %v233 = vld [vmem:[%s1 + $0x530] sm:$0xff]
  %v234 = vld [vmem:[%s1 + $0x538] sm:$0xff]
  %v235 = vld [vmem:[%s1 + $0x540] sm:$0xff]
  %v236 = vld [vmem:[%s1 + $0x548] sm:$0xff]
  %v237 = vld [vmem:[%s1 + $0x550] sm:$0xff]
  %v238 = vld [vmem:[%s1 + $0x558] sm:$0xff]
  %v239 = vld [vmem:[%s1 + $0x560] sm:$0xff]
  %v240 = vld [vmem:[%s1 + $0x568] sm:$0xff]
  %v241 = vld [vmem:[%s1 + $0x570] sm:$0xff]
  %v242 = vld [vmem:[%s1 + $0x578] sm:$0xff]
  %v243 = vld [vmem:[%s1 + $0x580] sm:$0xff]
  %v244 = vld [vmem:[%s1 + $0x588] sm:$0xff]
  %v245 = vld [vmem:[%s1 + $0x590] sm:$0xff]
  %v246 = vld [vmem:[%s1 + $0x598] sm:$0xff]
  %v247 = vld [vmem:[%s1 + $0x5a0] sm:$0xff]
  %v248 = vld [vmem:[%s1 + $0x5a8] sm:$0xff]
  %v249 = vld [vmem:[%s1 + $0x5b0] sm:$0xff]
  %v250 = vld [vmem:[%s1 + $0x5b8] sm:$0xff]
  %v251 = vld [vmem:[%s1 + $0x5c0] sm:$0xff]
  %v252 = vld [vmem:[%s1 + $0x5c8] sm:$0xff]
  %v253 = vld [vmem:[%s1 + $0x5d0] sm:$0xff]
  %v254 = vld [vmem:[%s1 + $0x5d8] sm:$0xff]
  %v255 = vld [vmem:[%s1 + $0x5e0] sm:$0xff]
  %v256 = vld [vmem:[%s1 + $0x5e8] sm:$0xff]
  %v257 = vld [vmem:[%s1 + $0x5f0] sm:$0xff]
  %v258 = vld [vmem:[%s1 + $0x5f8] sm:$0xff]
  %v259 = vld [vmem:[%s1 + $0x600] sm:$0xff]
  %v260 = vld [vmem:[%s1 + $0x608] sm:$0xff]
  %v261 = vld [vmem:[%s1 + $0x610] sm:$0xff]
  %v262 = vld [vmem:[%s1 + $0x618] sm:$0xff]
  %v263 = vld [vmem:[%s1 + $0x620] sm:$0xff]
  %v264 = vld [vmem:[%s1 + $0x628] sm:$0xff]
  %v265 = vld [vmem:[%s1 + $0x630] sm:$0xff]
  %v266 = vld [vmem:[%s1 + $0x638] sm:$0xff]
  %v267 = vld [vmem:[%s1 + $0x640] sm:$0xff]
  %v268 = vld [vmem:[%s1 + $0x648] sm:$0xff]
  %v269 = vld [vmem:[%s1 + $0x650] sm:$0xff]
  %v270 = vld [vmem:[%s1 + $0x658] sm:$0xff]
  %v271 = vld [vmem:[%s1 + $0x660] sm:$0xff]
  %v272 = vld [vmem:[%s1 + $0x668] sm:$0xff]
  %v273 = vld [vmem:[%s1 + $0x670] sm:$0xff]
  %v274 = vld [vmem:[%s1 + $0x678] sm:$0xff]
  %v275 = vld [vmem:[%s1 + $0x680] sm:$0xff]
  %v276 = vld [vmem:[%s1 + $0x688] sm:$0xff]
  %v277 = vld [vmem:[%s1 + $0x690] sm:$0xff]
  %v278 = vld [vmem:[%s1 + $0x698] sm:$0xff]
  %v279 = vld [vmem:[%s1 + $0x6a0] sm:$0xff]
  %v280 = vld [vmem:[%s1 + $0x6a8] sm:$0xff]
  %v281 = vld [vmem:[%s1 + $0x6b0] sm:$0xff]
  %v282 = vld [vmem:[%s1 + $0x6b8] sm:$0xff]
  %v283 = vld [vmem:[%s1 + $0x6c0] sm:$0xff]
  %v284 = vld [vmem:[%s1 + $0x6c8] sm:$0xff]
  %v285 = vld [vmem:[%s1 + $0x6d0] sm:$0xff]
  %v286 = vld [vmem:[%s1 + $0x6d8] sm:$0xff]
  %v287 = vld [vmem:[%s1 + $0x6e0] sm:$0xff]
  %v288 = vld [vmem:[%s1 + $0x6e8] sm:$0xff]
  %v289 = vld [vmem:[%s1 + $0x6f0] sm:$0xff]
  %v290 = vld [vmem:[%s1 + $0x6f8] sm:$0xff]
  %v291 = vld [vmem:[%s1 + $0x700] sm:$0xff]
  %v292 = vld [vmem:[%s1 + $0x708] sm:$0xff]
  %v293 = vld [vmem:[%s1 + $0x710] sm:$0xff]
  %v294 = vld [vmem:[%s1 + $0x718] sm:$0xff]
  %v295 = vld [vmem:[%s1 + $0x720] sm:$0xff]
  %v296 = vld [vmem:[%s1 + $0x728] sm:$0xff]
  %v297 = vld [vmem:[%s1 + $0x730] sm:$0xff]
  %v298 = vld [vmem:[%s1 + $0x738] sm:$0xff]
  %v299 = vld [vmem:[%s1 + $0x740] sm:$0xff]
  %v300 = vld [vmem:[%s1 + $0x748] sm:$0xff]
  %v301 = vld [vmem:[%s1 + $0x750] sm:$0xff]
  %v302 = vld [vmem:[%s1 + $0x758] sm:$0xff]
  %v303 = vld [vmem:[%s1 + $0x760] sm:$0xff]
  %v304 = vld [vmem:[%s1 + $0x768] sm:$0xff]
  %v305 = vld [vmem:[%s1 + $0x770] sm:$0xff]
  %v306 = vld [vmem:[%s1 + $0x778] sm:$0xff]
  %v307 = vld [vmem:[%s1 + $0x780] sm:$0xff]
  %v308 = vld [vmem:[%s1 + $0x788] sm:$0xff]
  %v309 = vld [vmem:[%s1 + $0x790] sm:$0xff]
  %v310 = vld [vmem:[%s1 + $0x798] sm:$0xff]
  %v311 = vld [vmem:[%s1 + $0x7a0] sm:$0xff]
  %v312 = vld [vmem:[%s1 + $0x7a8] sm:$0xff]
  %v313 = vld [vmem:[%s1 + $0x7b0] sm:$0xff]
  %v314 = vld [vmem:[%s1 + $0x7b8] sm:$0xff]
  %v315 = vld [vmem:[%s1 + $0x7c0] sm:$0xff]
  %v316 = vld [vmem:[%s1 + $0x7c8] sm:$0xff]
  %v317 = vld [vmem:[%s1 + $0x7d0] sm:$0xff]
  %v318 = vld [vmem:[%s1 + $0x7d8] sm:$0xff]
  %v319 = vld [vmem:[%s1 + $0x7e0] sm:$0xff]
  %v320 = vld [vmem:[%s1 + $0x7e8] sm:$0xff]
  %v321 = vld [vmem:[%s1 + $0x7f0] sm:$0xff]
  %v322 = vld [vmem:[%s1 + $0x7f8] sm:$0xff]
  %v323 = vld [vmem:[%s2] sm:$0xf]
  %v325 = vlaneseq
  %v326 = vshrl.u32 %v325, 7
  %v327 = vsub.s32 0, %v326
  %v328 = vrot.slane %v323, %v327
  %v329 = vlaneseq
  %v330 = vshrl.u32 %v329, 7
  %v331 = vsub.s32 1, %v330
  %v332 = vrot.slane %v323, %v331
  %v333 = vlaneseq
  %v334 = vshrl.u32 %v333, 7
  %v335 = vsub.s32 2, %v334
  %v336 = vrot.slane %v323, %v335
  %v337 = vlaneseq
  %v338 = vshrl.u32 %v337, 7
  %v339 = vsub.s32 3, %v338
  %v340 = vrot.slane %v323, %v339
  %v601 = vunpack.c.l.b16 %v67
  %v602 = vunpack.c.h.b16 %v67
  %v603 = vunpack.c.l.b16 %v68
  %v604 = vunpack.c.h.b16 %v68
  %v605 = vunpack.c.l.b16 %v69
  %v606 = vunpack.c.h.b16 %v69
  %v607 = vunpack.c.l.b16 %v70
  %v608 = vunpack.c.h.b16 %v70
  %v609 = vunpack.c.l.b16 %v71
  %v610 = vunpack.c.h.b16 %v71
  %v611 = vunpack.c.l.b16 %v72
  %v612 = vunpack.c.h.b16 %v72
  %v613 = vunpack.c.l.b16 %v73
  %v614 = vunpack.c.h.b16 %v73
  %v615 = vunpack.c.l.b16 %v74
  %v616 = vunpack.c.h.b16 %v74
  %v617 = vunpack.c.l.b16 %v75
  %v618 = vunpack.c.h.b16 %v75
  %v619 = vunpack.c.l.b16 %v76
  %v620 = vunpack.c.h.b16 %v76
  %v621 = vunpack.c.l.b16 %v77
  %v622 = vunpack.c.h.b16 %v77
  %v623 = vunpack.c.l.b16 %v78
  %v624 = vunpack.c.h.b16 %v78
  %v625 = vunpack.c.l.b16 %v79
  %v626 = vunpack.c.h.b16 %v79
  %v627 = vunpack.c.l.b16 %v80
  %v628 = vunpack.c.h.b16 %v80
  %v629 = vunpack.c.l.b16 %v81
  %v630 = vunpack.c.h.b16 %v81
  %v631 = vunpack.c.l.b16 %v82
  %v632 = vunpack.c.h.b16 %v82
  %v633 = vunpack.c.l.b16 %v83
  %v634 = vunpack.c.h.b16 %v83
  %v635 = vunpack.c.l.b16 %v84
  %v636 = vunpack.c.h.b16 %v84
  %v637 = vunpack.c.l.b16 %v85
  %v638 = vunpack.c.h.b16 %v85
  %v639 = vunpack.c.l.b16 %v86
  %v640 = vunpack.c.h.b16 %v86
  %v641 = vunpack.c.l.b16 %v87
  %v642 = vunpack.c.h.b16 %v87
  %v643 = vunpack.c.l.b16 %v88
  %v644 = vunpack.c.h.b16 %v88
  %v645 = vunpack.c.l.b16 %v89
  %v646 = vunpack.c.h.b16 %v89
  %v647 = vunpack.c.l.b16 %v90
  %v648 = vunpack.c.h.b16 %v90
  %v649 = vunpack.c.l.b16 %v91
  %v650 = vunpack.c.h.b16 %v91
  %v651 = vunpack.c.l.b16 %v92
  %v652 = vunpack.c.h.b16 %v92
  %v653 = vunpack.c.l.b16 %v93
  %v654 = vunpack.c.h.b16 %v93
  %v655 = vunpack.c.l.b16 %v94
  %v656 = vunpack.c.h.b16 %v94
  %v657 = vunpack.c.l.b16 %v95
  %v658 = vunpack.c.h.b16 %v95
  %v659 = vunpack.c.l.b16 %v96
  %v660 = vunpack.c.h.b16 %v96
  %v661 = vunpack.c.l.b16 %v97
  %v662 = vunpack.c.h.b16 %v97
  %v663 = vunpack.c.l.b16 %v98
  %v664 = vunpack.c.h.b16 %v98
  %v665 = vunpack.c.l.b16 %v99
  %v666 = vunpack.c.h.b16 %v99
  %v667 = vunpack.c.l.b16 %v100
  %v668 = vunpack.c.h.b16 %v100
  %v669 = vunpack.c.l.b16 %v101
  %v670 = vunpack.c.h.b16 %v101
  %v671 = vunpack.c.l.b16 %v102
  %v672 = vunpack.c.h.b16 %v102
  %v673 = vunpack.c.l.b16 %v103
  %v674 = vunpack.c.h.b16 %v103
  %v675 = vunpack.c.l.b16 %v104
  %v676 = vunpack.c.h.b16 %v104
  %v677 = vunpack.c.l.b16 %v105
  %v678 = vunpack.c.h.b16 %v105
  %v679 = vunpack.c.l.b16 %v106
  %v680 = vunpack.c.h.b16 %v106
  %v681 = vunpack.c.l.b16 %v107
  %v682 = vunpack.c.h.b16 %v107
  %v683 = vunpack.c.l.b16 %v108
  %v684 = vunpack.c.h.b16 %v108
  %v685 = vunpack.c.l.b16 %v109
  %v686 = vunpack.c.h.b16 %v109
  %v687 = vunpack.c.l.b16 %v110
  %v688 = vunpack.c.h.b16 %v110
  %v689 = vunpack.c.l.b16 %v111
  %v690 = vunpack.c.h.b16 %v111
  %v691 = vunpack.c.l.b16 %v112
  %v692 = vunpack.c.h.b16 %v112
  %v693 = vunpack.c.l.b16 %v113
  %v694 = vunpack.c.h.b16 %v113
  %v695 = vunpack.c.l.b16 %v114
  %v696 = vunpack.c.h.b16 %v114
  %v697 = vunpack.c.l.b16 %v115
  %v698 = vunpack.c.h.b16 %v115
  %v699 = vunpack.c.l.b16 %v116
  %v700 = vunpack.c.h.b16 %v116
  %v701 = vunpack.c.l.b16 %v117
  %v702 = vunpack.c.h.b16 %v117
  %v703 = vunpack.c.l.b16 %v118
  %v704 = vunpack.c.h.b16 %v118
  %v705 = vunpack.c.l.b16 %v119
  %v706 = vunpack.c.h.b16 %v119
  %v707 = vunpack.c.l.b16 %v120
  %v708 = vunpack.c.h.b16 %v120
  %v709 = vunpack.c.l.b16 %v121
  %v710 = vunpack.c.h.b16 %v121
  %v711 = vunpack.c.l.b16 %v122
  %v712 = vunpack.c.h.b16 %v122
  %v713 = vunpack.c.l.b16 %v123
  %v714 = vunpack.c.h.b16 %v123
  %v715 = vunpack.c.l.b16 %v124
  %v716 = vunpack.c.h.b16 %v124
  %v717 = vunpack.c.l.b16 %v125
  %v718 = vunpack.c.h.b16 %v125
  %v719 = vunpack.c.l.b16 %v126
  %v720 = vunpack.c.h.b16 %v126
  %v721 = vunpack.c.l.b16 %v127
  %v722 = vunpack.c.h.b16 %v127
  %v723 = vunpack.c.l.b16 %v128
  %v724 = vunpack.c.h.b16 %v128
  %v725 = vunpack.c.l.b16 %v129
  %v726 = vunpack.c.h.b16 %v129
  %v727 = vunpack.c.l.b16 %v130
  %v728 = vunpack.c.h.b16 %v130
  %v729 = vunpack.c.l.b16 %v131
  %v730 = vunpack.c.h.b16 %v131
  %v731 = vunpack.c.l.b16 %v132
  %v732 = vunpack.c.h.b16 %v132
  %v733 = vunpack.c.l.b16 %v133
  %v734 = vunpack.c.h.b16 %v133
  %v735 = vunpack.c.l.b16 %v134
  %v736 = vunpack.c.h.b16 %v134
  %v737 = vunpack.c.l.b16 %v135
  %v738 = vunpack.c.h.b16 %v135
  %v739 = vunpack.c.l.b16 %v136
  %v740 = vunpack.c.h.b16 %v136
  %v741 = vunpack.c.l.b16 %v137
  %v742 = vunpack.c.h.b16 %v137
  %v743 = vunpack.c.l.b16 %v138
  %v744 = vunpack.c.h.b16 %v138
  %v745 = vunpack.c.l.b16 %v139
  %v746 = vunpack.c.h.b16 %v139
  %v747 = vunpack.c.l.b16 %v140
  %v748 = vunpack.c.h.b16 %v140
  %v749 = vunpack.c.l.b16 %v141
  %v750 = vunpack.c.h.b16 %v141
  %v751 = vunpack.c.l.b16 %v142
  %v752 = vunpack.c.h.b16 %v142
  %v753 = vunpack.c.l.b16 %v143
  %v754 = vunpack.c.h.b16 %v143
  %v755 = vunpack.c.l.b16 %v144
  %v756 = vunpack.c.h.b16 %v144
  %v757 = vunpack.c.l.b16 %v145
  %v758 = vunpack.c.h.b16 %v145
  %v759 = vunpack.c.l.b16 %v146
  %v760 = vunpack.c.h.b16 %v146
  %v761 = vunpack.c.l.b16 %v147
  %v762 = vunpack.c.h.b16 %v147
  %v763 = vunpack.c.l.b16 %v148
  %v764 = vunpack.c.h.b16 %v148
  %v765 = vunpack.c.l.b16 %v149
  %v766 = vunpack.c.h.b16 %v149
  %v767 = vunpack.c.l.b16 %v150
  %v768 = vunpack.c.h.b16 %v150
  %v769 = vunpack.c.l.b16 %v151
  %v770 = vunpack.c.h.b16 %v151
  %v771 = vunpack.c.l.b16 %v152
  %v772 = vunpack.c.h.b16 %v152
  %v773 = vunpack.c.l.b16 %v153
  %v774 = vunpack.c.h.b16 %v153
  %v775 = vunpack.c.l.b16 %v154
  %v776 = vunpack.c.h.b16 %v154
  %v777 = vunpack.c.l.b16 %v155
  %v778 = vunpack.c.h.b16 %v155
  %v779 = vunpack.c.l.b16 %v156
  %v780 = vunpack.c.h.b16 %v156
  %v781 = vunpack.c.l.b16 %v157
  %v782 = vunpack.c.h.b16 %v157
  %v783 = vunpack.c.l.b16 %v158
  %v784 = vunpack.c.h.b16 %v158
  %v785 = vunpack.c.l.b16 %v159
  %v786 = vunpack.c.h.b16 %v159
  %v787 = vunpack.c.l.b16 %v160
  %v788 = vunpack.c.h.b16 %v160
  %v789 = vunpack.c.l.b16 %v161
  %v790 = vunpack.c.h.b16 %v161
  %v791 = vunpack.c.l.b16 %v162
  %v792 = vunpack.c.h.b16 %v162
  %v793 = vunpack.c.l.b16 %v163
  %v794 = vunpack.c.h.b16 %v163
  %v795 = vunpack.c.l.b16 %v164
  %v796 = vunpack.c.h.b16 %v164
  %v797 = vunpack.c.l.b16 %v165
  %v798 = vunpack.c.h.b16 %v165
  %v799 = vunpack.c.l.b16 %v166
  %v800 = vunpack.c.h.b16 %v166
  %v801 = vunpack.c.l.b16 %v167
  %v802 = vunpack.c.h.b16 %v167
  %v803 = vunpack.c.l.b16 %v168
  %v804 = vunpack.c.h.b16 %v168
  %v805 = vunpack.c.l.b16 %v169
  %v806 = vunpack.c.h.b16 %v169
  %v807 = vunpack.c.l.b16 %v170
  %v808 = vunpack.c.h.b16 %v170
  %v809 = vunpack.c.l.b16 %v171
  %v810 = vunpack.c.h.b16 %v171
  %v811 = vunpack.c.l.b16 %v172
  %v812 = vunpack.c.h.b16 %v172
  %v813 = vunpack.c.l.b16 %v173
  %v814 = vunpack.c.h.b16 %v173
  %v815 = vunpack.c.l.b16 %v174
  %v816 = vunpack.c.h.b16 %v174
  %v817 = vunpack.c.l.b16 %v175
  %v818 = vunpack.c.h.b16 %v175
  %v819 = vunpack.c.l.b16 %v176
  %v820 = vunpack.c.h.b16 %v176
  %v821 = vunpack.c.l.b16 %v177
  %v822 = vunpack.c.h.b16 %v177
  %v823 = vunpack.c.l.b16 %v178
  %v824 = vunpack.c.h.b16 %v178
  %v825 = vunpack.c.l.b16 %v179
  %v826 = vunpack.c.h.b16 %v179
  %v827 = vunpack.c.l.b16 %v180
  %v828 = vunpack.c.h.b16 %v180
  %v829 = vunpack.c.l.b16 %v181
  %v830 = vunpack.c.h.b16 %v181
  %v831 = vunpack.c.l.b16 %v182
  %v832 = vunpack.c.h.b16 %v182
  %v833 = vunpack.c.l.b16 %v183
  %v834 = vunpack.c.h.b16 %v183
  %v835 = vunpack.c.l.b16 %v184
  %v836 = vunpack.c.h.b16 %v184
  %v837 = vunpack.c.l.b16 %v185
  %v838 = vunpack.c.h.b16 %v185
  %v839 = vunpack.c.l.b16 %v186
  %v840 = vunpack.c.h.b16 %v186
  %v841 = vunpack.c.l.b16 %v187
  %v842 = vunpack.c.h.b16 %v187
  %v843 = vunpack.c.l.b16 %v188
  %v844 = vunpack.c.h.b16 %v188
  %v845 = vunpack.c.l.b16 %v189
  %v846 = vunpack.c.h.b16 %v189
  %v847 = vunpack.c.l.b16 %v190
  %v848 = vunpack.c.h.b16 %v190
  %v849 = vunpack.c.l.b16 %v191
  %v850 = vunpack.c.h.b16 %v191
  %v851 = vunpack.c.l.b16 %v192
  %v852 = vunpack.c.h.b16 %v192
  %v853 = vunpack.c.l.b16 %v193
  %v854 = vunpack.c.h.b16 %v193
  %v855 = vunpack.c.l.b16 %v194
  %v856 = vunpack.c.h.b16 %v194
  %v857 = vunpack.c.l.b16 %v195
  %v858 = vunpack.c.h.b16 %v195
  %v859 = vunpack.c.l.b16 %v196
  %v860 = vunpack.c.h.b16 %v196
  %v861 = vunpack.c.l.b16 %v197
  %v862 = vunpack.c.h.b16 %v197
  %v863 = vunpack.c.l.b16 %v198
  %v864 = vunpack.c.h.b16 %v198
  %v865 = vunpack.c.l.b16 %v199
  %v866 = vunpack.c.h.b16 %v199
  %v867 = vunpack.c.l.b16 %v200
  %v868 = vunpack.c.h.b16 %v200
  %v869 = vunpack.c.l.b16 %v201
  %v870 = vunpack.c.h.b16 %v201
  %v871 = vunpack.c.l.b16 %v202
  %v872 = vunpack.c.h.b16 %v202
  %v873 = vunpack.c.l.b16 %v203
  %v874 = vunpack.c.h.b16 %v203
  %v875 = vunpack.c.l.b16 %v204
  %v876 = vunpack.c.h.b16 %v204
  %v877 = vunpack.c.l.b16 %v205
  %v878 = vunpack.c.h.b16 %v205
  %v879 = vunpack.c.l.b16 %v206
  %v880 = vunpack.c.h.b16 %v206
  %v881 = vunpack.c.l.b16 %v207
  %v882 = vunpack.c.h.b16 %v207
  %v883 = vunpack.c.l.b16 %v208
  %v884 = vunpack.c.h.b16 %v208
  %v885 = vunpack.c.l.b16 %v209
  %v886 = vunpack.c.h.b16 %v209
  %v887 = vunpack.c.l.b16 %v210
  %v888 = vunpack.c.h.b16 %v210
  %v889 = vunpack.c.l.b16 %v211
  %v890 = vunpack.c.h.b16 %v211
  %v891 = vunpack.c.l.b16 %v212
  %v892 = vunpack.c.h.b16 %v212
  %v893 = vunpack.c.l.b16 %v213
  %v894 = vunpack.c.h.b16 %v213
  %v895 = vunpack.c.l.b16 %v214
  %v896 = vunpack.c.h.b16 %v214
  %v897 = vunpack.c.l.b16 %v215
  %v898 = vunpack.c.h.b16 %v215
  %v899 = vunpack.c.l.b16 %v216
  %v900 = vunpack.c.h.b16 %v216
  %v901 = vunpack.c.l.b16 %v217
  %v902 = vunpack.c.h.b16 %v217
  %v903 = vunpack.c.l.b16 %v218
  %v904 = vunpack.c.h.b16 %v218
  %v905 = vunpack.c.l.b16 %v219
  %v906 = vunpack.c.h.b16 %v219
  %v907 = vunpack.c.l.b16 %v220
  %v908 = vunpack.c.h.b16 %v220
  %v909 = vunpack.c.l.b16 %v221
  %v910 = vunpack.c.h.b16 %v221
  %v911 = vunpack.c.l.b16 %v222
  %v912 = vunpack.c.h.b16 %v222
  %v913 = vunpack.c.l.b16 %v223
  %v914 = vunpack.c.h.b16 %v223
  %v915 = vunpack.c.l.b16 %v224
  %v916 = vunpack.c.h.b16 %v224
  %v917 = vunpack.c.l.b16 %v225
  %v918 = vunpack.c.h.b16 %v225
  %v919 = vunpack.c.l.b16 %v226
  %v920 = vunpack.c.h.b16 %v226
  %v921 = vunpack.c.l.b16 %v227
  %v922 = vunpack.c.h.b16 %v227
  %v923 = vunpack.c.l.b16 %v228
  %v924 = vunpack.c.h.b16 %v228
  %v925 = vunpack.c.l.b16 %v229
  %v926 = vunpack.c.h.b16 %v229
  %v927 = vunpack.c.l.b16 %v230
  %v928 = vunpack.c.h.b16 %v230
  %v929 = vunpack.c.l.b16 %v231
  %v930 = vunpack.c.h.b16 %v231
  %v931 = vunpack.c.l.b16 %v232
  %v932 = vunpack.c.h.b16 %v232
  %v933 = vunpack.c.l.b16 %v233
  %v934 = vunpack.c.h.b16 %v233
  %v935 = vunpack.c.l.b16 %v234
  %v936 = vunpack.c.h.b16 %v234
  %v937 = vunpack.c.l.b16 %v235
  %v938 = vunpack.c.h.b16 %v235
  %v939 = vunpack.c.l.b16 %v236
  %v940 = vunpack.c.h.b16 %v236
  %v941 = vunpack.c.l.b16 %v237
  %v942 = vunpack.c.h.b16 %v237
  %v943 = vunpack.c.l.b16 %v238
  %v944 = vunpack.c.h.b16 %v238
  %v945 = vunpack.c.l.b16 %v239
  %v946 = vunpack.c.h.b16 %v239
  %v947 = vunpack.c.l.b16 %v240
  %v948 = vunpack.c.h.b16 %v240
  %v949 = vunpack.c.l.b16 %v241
  %v950 = vunpack.c.h.b16 %v241
  %v951 = vunpack.c.l.b16 %v242
  %v952 = vunpack.c.h.b16 %v242
  %v953 = vunpack.c.l.b16 %v243
  %v954 = vunpack.c.h.b16 %v243
  %v955 = vunpack.c.l.b16 %v244
  %v956 = vunpack.c.h.b16 %v244
  %v957 = vunpack.c.l.b16 %v245
  %v958 = vunpack.c.h.b16 %v245
  %v959 = vunpack.c.l.b16 %v246
  %v960 = vunpack.c.h.b16 %v246
  %v961 = vunpack.c.l.b16 %v247
  %v962 = vunpack.c.h.b16 %v247
  %v963 = vunpack.c.l.b16 %v248
  %v964 = vunpack.c.h.b16 %v248
  %v965 = vunpack.c.l.b16 %v249
  %v966 = vunpack.c.h.b16 %v249
  %v967 = vunpack.c.l.b16 %v250
  %v968 = vunpack.c.h.b16 %v250
  %v969 = vunpack.c.l.b16 %v251
  %v970 = vunpack.c.h.b16 %v251
  %v971 = vunpack.c.l.b16 %v252
  %v972 = vunpack.c.h.b16 %v252
  %v973 = vunpack.c.l.b16 %v253
  %v974 = vunpack.c.h.b16 %v253
  %v975 = vunpack.c.l.b16 %v254
  %v976 = vunpack.c.h.b16 %v254
  %v977 = vunpack.c.l.b16 %v255
  %v978 = vunpack.c.h.b16 %v255
  %v979 = vunpack.c.l.b16 %v256
  %v980 = vunpack.c.h.b16 %v256
  %v981 = vunpack.c.l.b16 %v257
  %v982 = vunpack.c.h.b16 %v257
  %v983 = vunpack.c.l.b16 %v258
  %v984 = vunpack.c.h.b16 %v258
  %v985 = vunpack.c.l.b16 %v259
  %v986 = vunpack.c.h.b16 %v259
  %v987 = vunpack.c.l.b16 %v260
  %v988 = vunpack.c.h.b16 %v260
  %v989 = vunpack.c.l.b16 %v261
  %v990 = vunpack.c.h.b16 %v261
  %v991 = vunpack.c.l.b16 %v262
  %v992 = vunpack.c.h.b16 %v262
  %v993 = vunpack.c.l.b16 %v263
  %v994 = vunpack.c.h.b16 %v263
  %v995 = vunpack.c.l.b16 %v264
  %v996 = vunpack.c.h.b16 %v264
  %v997 = vunpack.c.l.b16 %v265
  %v998 = vunpack.c.h.b16 %v265
  %v999 = vunpack.c.l.b16 %v266
  %v1000 = vunpack.c.h.b16 %v266
  %v1001 = vunpack.c.l.b16 %v267
  %v1002 = vunpack.c.h.b16 %v267
  %v1003 = vunpack.c.l.b16 %v268
  %v1004 = vunpack.c.h.b16 %v268
  %v1005 = vunpack.c.l.b16 %v269
  %v1006 = vunpack.c.h.b16 %v269
  %v1007 = vunpack.c.l.b16 %v270
  %v1008 = vunpack.c.h.b16 %v270
  %v1009 = vunpack.c.l.b16 %v271
  %v1010 = vunpack.c.h.b16 %v271
  %v1011 = vunpack.c.l.b16 %v272
  %v1012 = vunpack.c.h.b16 %v272
  %v1013 = vunpack.c.l.b16 %v273
  %v1014 = vunpack.c.h.b16 %v273
  %v1015 = vunpack.c.l.b16 %v274
  %v1016 = vunpack.c.h.b16 %v274
  %v1017 = vunpack.c.l.b16 %v275
  %v1018 = vunpack.c.h.b16 %v275
  %v1019 = vunpack.c.l.b16 %v276
  %v1020 = vunpack.c.h.b16 %v276
  %v1021 = vunpack.c.l.b16 %v277
  %v1022 = vunpack.c.h.b16 %v277
  %v1023 = vunpack.c.l.b16 %v278
  %v1024 = vunpack.c.h.b16 %v278
  %v1025 = vunpack.c.l.b16 %v279
  %v1026 = vunpack.c.h.b16 %v279
  %v1027 = vunpack.c.l.b16 %v280
  %v1028 = vunpack.c.h.b16 %v280
  %v1029 = vunpack.c.l.b16 %v281
  %v1030 = vunpack.c.h.b16 %v281
  %v1031 = vunpack.c.l.b16 %v282
  %v1032 = vunpack.c.h.b16 %v282
  %v1033 = vunpack.c.l.b16 %v283
  %v1034 = vunpack.c.h.b16 %v283
  %v1035 = vunpack.c.l.b16 %v284
  %v1036 = vunpack.c.h.b16 %v284
  %v1037 = vunpack.c.l.b16 %v285
  %v1038 = vunpack.c.h.b16 %v285
  %v1039 = vunpack.c.l.b16 %v286
  %v1040 = vunpack.c.h.b16 %v286
  %v1041 = vunpack.c.l.b16 %v287
  %v1042 = vunpack.c.h.b16 %v287
  %v1043 = vunpack.c.l.b16 %v288
  %v1044 = vunpack.c.h.b16 %v288
  %v1045 = vunpack.c.l.b16 %v289
  %v1046 = vunpack.c.h.b16 %v289
  %v1047 = vunpack.c.l.b16 %v290
  %v1048 = vunpack.c.h.b16 %v290
  %v1049 = vunpack.c.l.b16 %v291
  %v1050 = vunpack.c.h.b16 %v291
  %v1051 = vunpack.c.l.b16 %v292
  %v1052 = vunpack.c.h.b16 %v292
  %v1053 = vunpack.c.l.b16 %v293
  %v1054 = vunpack.c.h.b16 %v293
  %v1055 = vunpack.c.l.b16 %v294
  %v1056 = vunpack.c.h.b16 %v294
  %v1057 = vunpack.c.l.b16 %v295
  %v1058 = vunpack.c.h.b16 %v295
  %v1059 = vunpack.c.l.b16 %v296
  %v1060 = vunpack.c.h.b16 %v296
  %v1061 = vunpack.c.l.b16 %v297
  %v1062 = vunpack.c.h.b16 %v297
  %v1063 = vunpack.c.l.b16 %v298
  %v1064 = vunpack.c.h.b16 %v298
  %v1065 = vunpack.c.l.b16 %v299
  %v1066 = vunpack.c.h.b16 %v299
  %v1067 = vunpack.c.l.b16 %v300
  %v1068 = vunpack.c.h.b16 %v300
  %v1069 = vunpack.c.l.b16 %v301
  %v1070 = vunpack.c.h.b16 %v301
  %v1071 = vunpack.c.l.b16 %v302
  %v1072 = vunpack.c.h.b16 %v302
  %v1073 = vunpack.c.l.b16 %v303
  %v1074 = vunpack.c.h.b16 %v303
  %v1075 = vunpack.c.l.b16 %v304
  %v1076 = vunpack.c.h.b16 %v304
  %v1077 = vunpack.c.l.b16 %v305
  %v1078 = vunpack.c.h.b16 %v305
  %v1079 = vunpack.c.l.b16 %v306
  %v1080 = vunpack.c.h.b16 %v306
  %v1081 = vunpack.c.l.b16 %v307
  %v1082 = vunpack.c.h.b16 %v307
  %v1083 = vunpack.c.l.b16 %v308
  %v1084 = vunpack.c.h.b16 %v308
  %v1085 = vunpack.c.l.b16 %v309
  %v1086 = vunpack.c.h.b16 %v309
  %v1087 = vunpack.c.l.b16 %v310
  %v1088 = vunpack.c.h.b16 %v310
  %v1089 = vunpack.c.l.b16 %v311
  %v1090 = vunpack.c.h.b16 %v311
  %v1091 = vunpack.c.l.b16 %v312
  %v1092 = vunpack.c.h.b16 %v312
  %v1093 = vunpack.c.l.b16 %v313
  %v1094 = vunpack.c.h.b16 %v313
  %v1095 = vunpack.c.l.b16 %v314
  %v1096 = vunpack.c.h.b16 %v314
  %v1097 = vunpack.c.l.b16 %v315
  %v1098 = vunpack.c.h.b16 %v315
  %v1099 = vunpack.c.l.b16 %v316
  %v1100 = vunpack.c.h.b16 %v316
  %v1101 = vunpack.c.l.b16 %v317
  %v1102 = vunpack.c.h.b16 %v317
  %v1103 = vunpack.c.l.b16 %v318
  %v1104 = vunpack.c.h.b16 %v318
  %v1105 = vunpack.c.l.b16 %v319
  %v1106 = vunpack.c.h.b16 %v319
  %v1107 = vunpack.c.l.b16 %v320
  %v1108 = vunpack.c.h.b16 %v320
  %v1109 = vunpack.c.l.b16 %v321
  %v1110 = vunpack.c.h.b16 %v321
  %v1111 = vunpack.c.l.b16 %v322
  %v1112 = vunpack.c.h.b16 %v322
  %v1113 = vpack.c.b16 %v605, %v601
  %v1114 = vpack.c.b16 %v606, %v602
  %v1115 = vpack.c.b16 %v607, %v603
  %v1116 = vpack.c.b16 %v608, %v604
  %v1117 = vpack.c.b16 %v613, %v609
  %v1118 = vpack.c.b16 %v614, %v610
  %v1119 = vpack.c.b16 %v615, %v611
  %v1120 = vpack.c.b16 %v616, %v612
  %v1121 = vpack.c.b16 %v621, %v617
  %v1122 = vpack.c.b16 %v622, %v618
  %v1123 = vpack.c.b16 %v623, %v619
  %v1124 = vpack.c.b16 %v624, %v620
  %v1125 = vpack.c.b16 %v629, %v625
  %v1126 = vpack.c.b16 %v630, %v626
  %v1127 = vpack.c.b16 %v631, %v627
  %v1128 = vpack.c.b16 %v632, %v628
  %v1129 = vpack.c.b16 %v637, %v633
  %v1130 = vpack.c.b16 %v638, %v634
  %v1131 = vpack.c.b16 %v639, %v635
  %v1132 = vpack.c.b16 %v640, %v636
  %v1133 = vpack.c.b16 %v645, %v641
  %v1134 = vpack.c.b16 %v646, %v642
  %v1135 = vpack.c.b16 %v647, %v643
  %v1136 = vpack.c.b16 %v648, %v644
  %v1137 = vpack.c.b16 %v653, %v649
  %v1138 = vpack.c.b16 %v654, %v650
  %v1139 = vpack.c.b16 %v655, %v651
  %v1140 = vpack.c.b16 %v656, %v652
  %v1141 = vpack.c.b16 %v661, %v657
  %v1142 = vpack.c.b16 %v662, %v658
  %v1143 = vpack.c.b16 %v663, %v659
  %v1144 = vpack.c.b16 %v664, %v660
  %v1145 = vpack.c.b16 %v669, %v665
  %v1146 = vpack.c.b16 %v670, %v666
  %v1147 = vpack.c.b16 %v671, %v667
  %v1148 = vpack.c.b16 %v672, %v668
  %v1149 = vpack.c.b16 %v677, %v673
  %v1150 = vpack.c.b16 %v678, %v674
  %v1151 = vpack.c.b16 %v679, %v675
  %v1152 = vpack.c.b16 %v680, %v676
  %v1153 = vpack.c.b16 %v685, %v681
  %v1154 = vpack.c.b16 %v686, %v682
  %v1155 = vpack.c.b16 %v687, %v683
  %v1156 = vpack.c.b16 %v688, %v684
  %v1157 = vpack.c.b16 %v693, %v689
  %v1158 = vpack.c.b16 %v694, %v690
  %v1159 = vpack.c.b16 %v695, %v691
  %v1160 = vpack.c.b16 %v696, %v692
  %v1161 = vpack.c.b16 %v701, %v697
  %v1162 = vpack.c.b16 %v702, %v698
  %v1163 = vpack.c.b16 %v703, %v699
  %v1164 = vpack.c.b16 %v704, %v700
  %v1165 = vpack.c.b16 %v709, %v705
  %v1166 = vpack.c.b16 %v710, %v706
  %v1167 = vpack.c.b16 %v711, %v707
  %v1168 = vpack.c.b16 %v712, %v708
  %v1169 = vpack.c.b16 %v717, %v713
  %v1170 = vpack.c.b16 %v718, %v714
  %v1171 = vpack.c.b16 %v719, %v715
  %v1172 = vpack.c.b16 %v720, %v716
  %v1173 = vpack.c.b16 %v725, %v721
  %v1174 = vpack.c.b16 %v726, %v722
  %v1175 = vpack.c.b16 %v727, %v723
  %v1176 = vpack.c.b16 %v728, %v724
  %v1177 = vpack.c.b16 %v733, %v729
  %v1178 = vpack.c.b16 %v734, %v730
  %v1179 = vpack.c.b16 %v735, %v731
  %v1180 = vpack.c.b16 %v736, %v732
  %v1181 = vpack.c.b16 %v741, %v737
  %v1182 = vpack.c.b16 %v742, %v738
  %v1183 = vpack.c.b16 %v743, %v739
  %v1184 = vpack.c.b16 %v744, %v740
  %v1185 = vpack.c.b16 %v749, %v745
  %v1186 = vpack.c.b16 %v750, %v746
  %v1187 = vpack.c.b16 %v751, %v747
  %v1188 = vpack.c.b16 %v752, %v748
  %v1189 = vpack.c.b16 %v757, %v753
  %v1190 = vpack.c.b16 %v758, %v754
  %v1191 = vpack.c.b16 %v759, %v755
  %v1192 = vpack.c.b16 %v760, %v756
  %v1193 = vpack.c.b16 %v765, %v761
  %v1194 = vpack.c.b16 %v766, %v762
  %v1195 = vpack.c.b16 %v767, %v763
  %v1196 = vpack.c.b16 %v768, %v764
  %v1197 = vpack.c.b16 %v773, %v769
  %v1198 = vpack.c.b16 %v774, %v770
  %v1199 = vpack.c.b16 %v775, %v771
  %v1200 = vpack.c.b16 %v776, %v772
  %v1201 = vpack.c.b16 %v781, %v777
  %v1202 = vpack.c.b16 %v782, %v778
  %v1203 = vpack.c.b16 %v783, %v779
  %v1204 = vpack.c.b16 %v784, %v780
  %v1205 = vpack.c.b16 %v789, %v785
  %v1206 = vpack.c.b16 %v790, %v786
  %v1207 = vpack.c.b16 %v791, %v787
  %v1208 = vpack.c.b16 %v792, %v788
  %v1209 = vpack.c.b16 %v797, %v793
  %v1210 = vpack.c.b16 %v798, %v794
  %v1211 = vpack.c.b16 %v799, %v795
  %v1212 = vpack.c.b16 %v800, %v796
  %v1213 = vpack.c.b16 %v805, %v801
  %v1214 = vpack.c.b16 %v806, %v802
  %v1215 = vpack.c.b16 %v807, %v803
  %v1216 = vpack.c.b16 %v808, %v804
  %v1217 = vpack.c.b16 %v813, %v809
  %v1218 = vpack.c.b16 %v814, %v810
  %v1219 = vpack.c.b16 %v815, %v811
  %v1220 = vpack.c.b16 %v816, %v812
  %v1221 = vpack.c.b16 %v821, %v817
  %v1222 = vpack.c.b16 %v822, %v818
  %v1223 = vpack.c.b16 %v823, %v819
  %v1224 = vpack.c.b16 %v824, %v820
  %v1225 = vpack.c.b16 %v829, %v825
  %v1226 = vpack.c.b16 %v830, %v826
  %v1227 = vpack.c.b16 %v831, %v827
  %v1228 = vpack.c.b16 %v832, %v828
  %v1229 = vpack.c.b16 %v837, %v833
  %v1230 = vpack.c.b16 %v838, %v834
  %v1231 = vpack.c.b16 %v839, %v835
  %v1232 = vpack.c.b16 %v840, %v836
  %v1233 = vpack.c.b16 %v845, %v841
  %v1234 = vpack.c.b16 %v846, %v842
  %v1235 = vpack.c.b16 %v847, %v843
  %v1236 = vpack.c.b16 %v848, %v844
  %v1237 = vpack.c.b16 %v853, %v849
  %v1238 = vpack.c.b16 %v854, %v850
  %v1239 = vpack.c.b16 %v855, %v851
  %v1240 = vpack.c.b16 %v856, %v852
  %v1241 = vpack.c.b16 %v861, %v857
  %v1242 = vpack.c.b16 %v862, %v858
  %v1243 = vpack.c.b16 %v863, %v859
  %v1244 = vpack.c.b16 %v864, %v860
  %v1245 = vpack.c.b16 %v869, %v865
  %v1246 = vpack.c.b16 %v870, %v866
  %v1247 = vpack.c.b16 %v871, %v867
  %v1248 = vpack.c.b16 %v872, %v868
  %v1249 = vpack.c.b16 %v877, %v873
  %v1250 = vpack.c.b16 %v878, %v874
  %v1251 = vpack.c.b16 %v879, %v875
  %v1252 = vpack.c.b16 %v880, %v876
  %v1253 = vpack.c.b16 %v885, %v881
  %v1254 = vpack.c.b16 %v886, %v882
  %v1255 = vpack.c.b16 %v887, %v883
  %v1256 = vpack.c.b16 %v888, %v884
  %v1257 = vpack.c.b16 %v893, %v889
  %v1258 = vpack.c.b16 %v894, %v890
  %v1259 = vpack.c.b16 %v895, %v891
  %v1260 = vpack.c.b16 %v896, %v892
  %v1261 = vpack.c.b16 %v901, %v897
  %v1262 = vpack.c.b16 %v902, %v898
  %v1263 = vpack.c.b16 %v903, %v899
  %v1264 = vpack.c.b16 %v904, %v900
  %v1265 = vpack.c.b16 %v909, %v905
  %v1266 = vpack.c.b16 %v910, %v906
  %v1267 = vpack.c.b16 %v911, %v907
  %v1268 = vpack.c.b16 %v912, %v908
  %v1269 = vpack.c.b16 %v917, %v913
  %v1270 = vpack.c.b16 %v918, %v914
  %v1271 = vpack.c.b16 %v919, %v915
  %v1272 = vpack.c.b16 %v920, %v916
  %v1273 = vpack.c.b16 %v925, %v921
  %v1274 = vpack.c.b16 %v926, %v922
  %v1275 = vpack.c.b16 %v927, %v923
  %v1276 = vpack.c.b16 %v928, %v924
  %v1277 = vpack.c.b16 %v933, %v929
  %v1278 = vpack.c.b16 %v934, %v930
  %v1279 = vpack.c.b16 %v935, %v931
  %v1280 = vpack.c.b16 %v936, %v932
  %v1281 = vpack.c.b16 %v941, %v937
  %v1282 = vpack.c.b16 %v942, %v938
  %v1283 = vpack.c.b16 %v943, %v939
  %v1284 = vpack.c.b16 %v944, %v940
  %v1285 = vpack.c.b16 %v949, %v945
  %v1286 = vpack.c.b16 %v950, %v946
  %v1287 = vpack.c.b16 %v951, %v947
  %v1288 = vpack.c.b16 %v952, %v948
  %v1289 = vpack.c.b16 %v957, %v953
  %v1290 = vpack.c.b16 %v958, %v954
  %v1291 = vpack.c.b16 %v959, %v955
  %v1292 = vpack.c.b16 %v960, %v956
  %v1293 = vpack.c.b16 %v965, %v961
  %v1294 = vpack.c.b16 %v966, %v962
  %v1295 = vpack.c.b16 %v967, %v963
  %v1296 = vpack.c.b16 %v968, %v964
  %v1297 = vpack.c.b16 %v973, %v969
  %v1298 = vpack.c.b16 %v974, %v970
  %v1299 = vpack.c.b16 %v975, %v971
  %v1300 = vpack.c.b16 %v976, %v972
  %v1301 = vpack.c.b16 %v981, %v977
  %v1302 = vpack.c.b16 %v982, %v978
  %v1303 = vpack.c.b16 %v983, %v979
  %v1304 = vpack.c.b16 %v984, %v980
  %v1305 = vpack.c.b16 %v989, %v985
  %v1306 = vpack.c.b16 %v990, %v986
  %v1307 = vpack.c.b16 %v991, %v987
  %v1308 = vpack.c.b16 %v992, %v988
  %v1309 = vpack.c.b16 %v997, %v993
  %v1310 = vpack.c.b16 %v998, %v994
  %v1311 = vpack.c.b16 %v999, %v995
  %v1312 = vpack.c.b16 %v1000, %v996
  %v1313 = vpack.c.b16 %v1005, %v1001
  %v1314 = vpack.c.b16 %v1006, %v1002
  %v1315 = vpack.c.b16 %v1007, %v1003
  %v1316 = vpack.c.b16 %v1008, %v1004
  %v1317 = vpack.c.b16 %v1013, %v1009
  %v1318 = vpack.c.b16 %v1014, %v1010
  %v1319 = vpack.c.b16 %v1015, %v1011
  %v1320 = vpack.c.b16 %v1016, %v1012
  %v1321 = vpack.c.b16 %v1021, %v1017
  %v1322 = vpack.c.b16 %v1022, %v1018
  %v1323 = vpack.c.b16 %v1023, %v1019
  %v1324 = vpack.c.b16 %v1024, %v1020
  %v1325 = vpack.c.b16 %v1029, %v1025
  %v1326 = vpack.c.b16 %v1030, %v1026
  %v1327 = vpack.c.b16 %v1031, %v1027
  %v1328 = vpack.c.b16 %v1032, %v1028
  %v1329 = vpack.c.b16 %v1037, %v1033
  %v1330 = vpack.c.b16 %v1038, %v1034
  %v1331 = vpack.c.b16 %v1039, %v1035
  %v1332 = vpack.c.b16 %v1040, %v1036
  %v1333 = vpack.c.b16 %v1045, %v1041
  %v1334 = vpack.c.b16 %v1046, %v1042
  %v1335 = vpack.c.b16 %v1047, %v1043
  %v1336 = vpack.c.b16 %v1048, %v1044
  %v1337 = vpack.c.b16 %v1053, %v1049
  %v1338 = vpack.c.b16 %v1054, %v1050
  %v1339 = vpack.c.b16 %v1055, %v1051
  %v1340 = vpack.c.b16 %v1056, %v1052
  %v1341 = vpack.c.b16 %v1061, %v1057
  %v1342 = vpack.c.b16 %v1062, %v1058
  %v1343 = vpack.c.b16 %v1063, %v1059
  %v1344 = vpack.c.b16 %v1064, %v1060
  %v1345 = vpack.c.b16 %v1069, %v1065
  %v1346 = vpack.c.b16 %v1070, %v1066
  %v1347 = vpack.c.b16 %v1071, %v1067
  %v1348 = vpack.c.b16 %v1072, %v1068
  %v1349 = vpack.c.b16 %v1077, %v1073
  %v1350 = vpack.c.b16 %v1078, %v1074
  %v1351 = vpack.c.b16 %v1079, %v1075
  %v1352 = vpack.c.b16 %v1080, %v1076
  %v1353 = vpack.c.b16 %v1085, %v1081
  %v1354 = vpack.c.b16 %v1086, %v1082
  %v1355 = vpack.c.b16 %v1087, %v1083
  %v1356 = vpack.c.b16 %v1088, %v1084
  %v1357 = vpack.c.b16 %v1093, %v1089
  %v1358 = vpack.c.b16 %v1094, %v1090
  %v1359 = vpack.c.b16 %v1095, %v1091
  %v1360 = vpack.c.b16 %v1096, %v1092
  %v1361 = vpack.c.b16 %v1101, %v1097
  %v1362 = vpack.c.b16 %v1102, %v1098
  %v1363 = vpack.c.b16 %v1103, %v1099
  %v1364 = vpack.c.b16 %v1104, %v1100
  %v1365 = vpack.c.b16 %v1109, %v1105
  %v1366 = vpack.c.b16 %v1110, %v1106
  %v1367 = vpack.c.b16 %v1111, %v1107
  %v1368 = vpack.c.b16 %v1112, %v1108
  %1625 = vmatprep.subr.bf16.mxu0 %v1142
  %1626 = vmatpush1.bf16.msra.mxu0 %v1141
  %1627 = vmatprep.subr.bf16.mxu0 %v1138
  %1628 = vmatpush1.bf16.msra.mxu0 %v1137
  %1629 = vmatprep.subr.bf16.mxu0 %v1134
  %1630 = vmatpush1.bf16.msra.mxu0 %v1133
  %1631 = vmatprep.subr.bf16.mxu0 %v1130
  %1632 = vmatpush1.bf16.msra.mxu0 %v1129
  %1633 = vmatprep.subr.bf16.mxu0 %v1126
  %1634 = vmatpush1.bf16.msra.mxu0 %v1125
  %1635 = vmatprep.subr.bf16.mxu0 %v1122
  %1636 = vmatpush1.bf16.msra.mxu0 %v1121
  %1637 = vmatprep.subr.bf16.mxu0 %v1118
  %1638 = vmatpush1.bf16.msra.mxu0 %v1117
  %1639 = vmatprep.subr.bf16.mxu0 %v1114
  %1640 = vmatpush1.bf16.msra.mxu0 %v1113
  %1641 = vmatprep.subr.bf16.mxu0 %v1174
  %1642 = vmatpush2.bf16.msra.mxu0 %v1173
  %1643 = vmatprep.subr.bf16.mxu0 %v1170
  %1644 = vmatpush2.bf16.msra.mxu0 %v1169
  %1645 = vmatprep.subr.bf16.mxu0 %v1166
  %1646 = vmatpush2.bf16.msra.mxu0 %v1165
  %1647 = vmatprep.subr.bf16.mxu0 %v1162
  %1648 = vmatpush2.bf16.msra.mxu0 %v1161
  %1649 = vmatprep.subr.bf16.mxu0 %v1158
  %1650 = vmatpush2.bf16.msra.mxu0 %v1157
  %1651 = vmatprep.subr.bf16.mxu0 %v1154
  %1652 = vmatpush2.bf16.msra.mxu0 %v1153
  %1653 = vmatprep.subr.bf16.mxu0 %v1150
  %1654 = vmatpush2.bf16.msra.mxu0 %v1149
  %1655 = vmatprep.subr.bf16.mxu0 %v1146
  %1656 = vmatpush2.bf16.msra.mxu0 %v1145
  %1657 = vmatprep.mubr.bf16.mxu0 %v60
  %1658 = vmatmul.mubr.bf16.gmra.mxu0 %v59
  %v1659 = vpop.f32.mrf.mxu0
  %v1660 = vadd.f32 %v328, %v1659
  %v1661 = vpop.f32.mrf.mxu0
  %v1662 = vadd.f32 %v332, %v1661
  %v1663 = vpop.f32.mrf.mxu0
  %v1664 = vpop.f32.mrf.mxu0
  %1665 = vdwg.mxu0
  %1666 = vmatprep.subr.bf16.mxu0 %v1206
  %1667 = vmatpush1.bf16.msra.mxu0 %v1205
  %1668 = vmatprep.subr.bf16.mxu0 %v1202
  %1669 = vmatpush1.bf16.msra.mxu0 %v1201
  %1670 = vmatprep.subr.bf16.mxu0 %v1198
  %1671 = vmatpush1.bf16.msra.mxu0 %v1197
  %1672 = vmatprep.subr.bf16.mxu0 %v1194
  %1673 = vmatpush1.bf16.msra.mxu0 %v1193
  %1674 = vmatprep.subr.bf16.mxu0 %v1190
  %1675 = vmatpush1.bf16.msra.mxu0 %v1189
  %1676 = vmatprep.subr.bf16.mxu0 %v1186
  %1677 = vmatpush1.bf16.msra.mxu0 %v1185
  %1678 = vmatprep.subr.bf16.mxu0 %v1182
  %1679 = vmatpush1.bf16.msra.mxu0 %v1181
  %1680 = vmatprep.subr.bf16.mxu0 %v1178
  %1681 = vmatpush1.bf16.msra.mxu0 %v1177
  %1682 = vmatprep.subr.bf16.mxu0 %v1238
  %1683 = vmatpush2.bf16.msra.mxu0 %v1237
  %1684 = vmatprep.subr.bf16.mxu0 %v1234
  %1685 = vmatpush2.bf16.msra.mxu0 %v1233
  %1686 = vmatprep.subr.bf16.mxu0 %v1230
  %1687 = vmatpush2.bf16.msra.mxu0 %v1229
  %1688 = vmatprep.subr.bf16.mxu0 %v1226
  %1689 = vmatpush2.bf16.msra.mxu0 %v1225
  %1690 = vmatprep.subr.bf16.mxu0 %v1222
  %1691 = vmatpush2.bf16.msra.mxu0 %v1221
  %1692 = vmatprep.subr.bf16.mxu0 %v1218
  %1693 = vmatpush2.bf16.msra.mxu0 %v1217
  %1694 = vmatprep.subr.bf16.mxu0 %v1214
  %1695 = vmatpush2.bf16.msra.mxu0 %v1213
  %1696 = vmatprep.subr.bf16.mxu0 %v1210
  %1697 = vmatpush2.bf16.msra.mxu0 %v1209
  %1698 = vmatprep.mubr.bf16.mxu0 %v62
  %1699 = vmatmul.mubr.bf16.gmra.mxu0 %v61
  %v1700 = vpop.f32.mrf.mxu0
  %v1701 = vadd.f32 %v1660, %v1700
  %v1702 = vpop.f32.mrf.mxu0
  %v1703 = vadd.f32 %v1662, %v1702
  %v1704 = vpop.f32.mrf.mxu0
  %v1705 = vpop.f32.mrf.mxu0
  %1706 = vdwg.mxu0
  %1707 = vmatprep.subr.bf16.mxu0 %v1270
  %1708 = vmatpush1.bf16.msra.mxu0 %v1269
  %1709 = vmatprep.subr.bf16.mxu0 %v1266
  %1710 = vmatpush1.bf16.msra.mxu0 %v1265
  %1711 = vmatprep.subr.bf16.mxu0 %v1262
  %1712 = vmatpush1.bf16.msra.mxu0 %v1261
  %1713 = vmatprep.subr.bf16.mxu0 %v1258
  %1714 = vmatpush1.bf16.msra.mxu0 %v1257
  %1715 = vmatprep.subr.bf16.mxu0 %v1254
  %1716 = vmatpush1.bf16.msra.mxu0 %v1253
  %1717 = vmatprep.subr.bf16.mxu0 %v1250
  %1718 = vmatpush1.bf16.msra.mxu0 %v1249
  %1719 = vmatprep.subr.bf16.mxu0 %v1246
  %1720 = vmatpush1.bf16.msra.mxu0 %v1245
  %1721 = vmatprep.subr.bf16.mxu0 %v1242
  %1722 = vmatpush1.bf16.msra.mxu0 %v1241
  %1723 = vmatprep.subr.bf16.mxu0 %v1302
  %1724 = vmatpush2.bf16.msra.mxu0 %v1301
  %1725 = vmatprep.subr.bf16.mxu0 %v1298
  %1726 = vmatpush2.bf16.msra.mxu0 %v1297
  %1727 = vmatprep.subr.bf16.mxu0 %v1294
  %1728 = vmatpush2.bf16.msra.mxu0 %v1293
  %1729 = vmatprep.subr.bf16.mxu0 %v1290
  %1730 = vmatpush2.bf16.msra.mxu0 %v1289
  %1731 = vmatprep.subr.bf16.mxu0 %v1286
  %1732 = vmatpush2.bf16.msra.mxu0 %v1285
  %1733 = vmatprep.subr.bf16.mxu0 %v1282
  %1734 = vmatpush2.bf16.msra.mxu0 %v1281
  %1735 = vmatprep.subr.bf16.mxu0 %v1278
  %1736 = vmatpush2.bf16.msra.mxu0 %v1277
  %1737 = vmatprep.subr.bf16.mxu0 %v1274
  %1738 = vmatpush2.bf16.msra.mxu0 %v1273
  %1739 = vmatprep.mubr.bf16.mxu0 %v64
  %1740 = vmatmul.mubr.bf16.gmra.mxu0 %v63
  %v1741 = vpop.f32.mrf.mxu0
  %v1742 = vadd.f32 %v1701, %v1741
  %v1743 = vpop.f32.mrf.mxu0
  %v1744 = vadd.f32 %v1703, %v1743
  %v1745 = vpop.f32.mrf.mxu0
  %v1746 = vpop.f32.mrf.mxu0
  %1747 = vdwg.mxu0
  %1748 = vmatprep.subr.bf16.mxu0 %v1334
  %1749 = vmatpush1.bf16.msra.mxu0 %v1333
  %1750 = vmatprep.subr.bf16.mxu0 %v1330
  %1751 = vmatpush1.bf16.msra.mxu0 %v1329
  %1752 = vmatprep.subr.bf16.mxu0 %v1326
  %1753 = vmatpush1.bf16.msra.mxu0 %v1325
  %1754 = vmatprep.subr.bf16.mxu0 %v1322
  %1755 = vmatpush1.bf16.msra.mxu0 %v1321
  %1756 = vmatprep.subr.bf16.mxu0 %v1318
  %1757 = vmatpush1.bf16.msra.mxu0 %v1317
  %1758 = vmatprep.subr.bf16.mxu0 %v1314
  %1759 = vmatpush1.bf16.msra.mxu0 %v1313
  %1760 = vmatprep.subr.bf16.mxu0 %v1310
  %1761 = vmatpush1.bf16.msra.mxu0 %v1309
  %1762 = vmatprep.subr.bf16.mxu0 %v1306
  %1763 = vmatpush1.bf16.msra.mxu0 %v1305
  %1764 = vmatprep.subr.bf16.mxu0 %v1366
  %1765 = vmatpush2.bf16.msra.mxu0 %v1365
  %1766 = vmatprep.subr.bf16.mxu0 %v1362
  %1767 = vmatpush2.bf16.msra.mxu0 %v1361
  %1768 = vmatprep.subr.bf16.mxu0 %v1358
  %1769 = vmatpush2.bf16.msra.mxu0 %v1357
  %1770 = vmatprep.subr.bf16.mxu0 %v1354
  %1771 = vmatpush2.bf16.msra.mxu0 %v1353
  %1772 = vmatprep.subr.bf16.mxu0 %v1350
  %1773 = vmatpush2.bf16.msra.mxu0 %v1349
  %1774 = vmatprep.subr.bf16.mxu0 %v1346
  %1775 = vmatpush2.bf16.msra.mxu0 %v1345
  %1776 = vmatprep.subr.bf16.mxu0 %v1342
  %1777 = vmatpush2.bf16.msra.mxu0 %v1341
  %1778 = vmatprep.subr.bf16.mxu0 %v1338
  %1779 = vmatpush2.bf16.msra.mxu0 %v1337
  %1780 = vmatprep.mubr.bf16.mxu0 %v66
  %1781 = vmatmul.mubr.bf16.gmra.mxu0 %v65
  %v1782 = vpop.f32.mrf.mxu0
  %v1783 = vadd.f32 %v1742, %v1782
  %v1784 = vpop.f32.mrf.mxu0
  %v1785 = vadd.f32 %v1744, %v1784
  %v1786 = vpop.f32.mrf.mxu0
  %v1787 = vpop.f32.mrf.mxu0
  %1788 = vdwg.mxu0
  %1789 = vmatprep.subr.bf16.mxu0 %v1144
  %1790 = vmatpush1.bf16.msra.mxu0 %v1143
  %1791 = vmatprep.subr.bf16.mxu0 %v1140
  %1792 = vmatpush1.bf16.msra.mxu0 %v1139
  %1793 = vmatprep.subr.bf16.mxu0 %v1136
  %1794 = vmatpush1.bf16.msra.mxu0 %v1135
  %1795 = vmatprep.subr.bf16.mxu0 %v1132
  %1796 = vmatpush1.bf16.msra.mxu0 %v1131
  %1797 = vmatprep.subr.bf16.mxu0 %v1128
  %1798 = vmatpush1.bf16.msra.mxu0 %v1127
  %1799 = vmatprep.subr.bf16.mxu0 %v1124
  %1800 = vmatpush1.bf16.msra.mxu0 %v1123
  %1801 = vmatprep.subr.bf16.mxu0 %v1120
  %1802 = vmatpush1.bf16.msra.mxu0 %v1119
  %1803 = vmatprep.subr.bf16.mxu0 %v1116
  %1804 = vmatpush1.bf16.msra.mxu0 %v1115
  %1805 = vmatprep.subr.bf16.mxu0 %v1176
  %1806 = vmatpush2.bf16.msra.mxu0 %v1175
  %1807 = vmatprep.subr.bf16.mxu0 %v1172
  %1808 = vmatpush2.bf16.msra.mxu0 %v1171
  %1809 = vmatprep.subr.bf16.mxu0 %v1168
  %1810 = vmatpush2.bf16.msra.mxu0 %v1167
  %1811 = vmatprep.subr.bf16.mxu0 %v1164
  %1812 = vmatpush2.bf16.msra.mxu0 %v1163
  %1813 = vmatprep.subr.bf16.mxu0 %v1160
  %1814 = vmatpush2.bf16.msra.mxu0 %v1159
  %1815 = vmatprep.subr.bf16.mxu0 %v1156
  %1816 = vmatpush2.bf16.msra.mxu0 %v1155
  %1817 = vmatprep.subr.bf16.mxu0 %v1152
  %1818 = vmatpush2.bf16.msra.mxu0 %v1151
  %1819 = vmatprep.subr.bf16.mxu0 %v1148
  %1820 = vmatpush2.bf16.msra.mxu0 %v1147
  %1821 = vmatprep.mubr.bf16.mxu0 %v60
  %1822 = vmatmul.mubr.bf16.gmra.mxu0 %v59
  %v1823 = vpop.f32.mrf.mxu0
  %v1824 = vadd.f32 %v336, %v1823
  %v1825 = vpop.f32.mrf.mxu0
  %v1826 = vadd.f32 %v340, %v1825
  %v1827 = vpop.f32.mrf.mxu0
  %v1828 = vpop.f32.mrf.mxu0
  %1829 = vdwg.mxu0
  %1830 = vmatprep.subr.bf16.mxu0 %v1208
  %1831 = vmatpush1.bf16.msra.mxu0 %v1207
  %1832 = vmatprep.subr.bf16.mxu0 %v1204
  %1833 = vmatpush1.bf16.msra.mxu0 %v1203
  %1834 = vmatprep.subr.bf16.mxu0 %v1200
  %1835 = vmatpush1.bf16.msra.mxu0 %v1199
  %1836 = vmatprep.subr.bf16.mxu0 %v1196
  %1837 = vmatpush1.bf16.msra.mxu0 %v1195
  %1838 = vmatprep.subr.bf16.mxu0 %v1192
  %1839 = vmatpush1.bf16.msra.mxu0 %v1191
  %1840 = vmatprep.subr.bf16.mxu0 %v1188
  %1841 = vmatpush1.bf16.msra.mxu0 %v1187
  %1842 = vmatprep.subr.bf16.mxu0 %v1184
  %1843 = vmatpush1.bf16.msra.mxu0 %v1183
  %1844 = vmatprep.subr.bf16.mxu0 %v1180
  %1845 = vmatpush1.bf16.msra.mxu0 %v1179
  %1846 = vmatprep.subr.bf16.mxu0 %v1240
  %1847 = vmatpush2.bf16.msra.mxu0 %v1239
  %1848 = vmatprep.subr.bf16.mxu0 %v1236
  %1849 = vmatpush2.bf16.msra.mxu0 %v1235
  %1850 = vmatprep.subr.bf16.mxu0 %v1232
  %1851 = vmatpush2.bf16.msra.mxu0 %v1231
  %1852 = vmatprep.subr.bf16.mxu0 %v1228
  %1853 = vmatpush2.bf16.msra.mxu0 %v1227
  %1854 = vmatprep.subr.bf16.mxu0 %v1224
  %1855 = vmatpush2.bf16.msra.mxu0 %v1223
  %1856 = vmatprep.subr.bf16.mxu0 %v1220
  %1857 = vmatpush2.bf16.msra.mxu0 %v1219
  %1858 = vmatprep.subr.bf16.mxu0 %v1216
  %1859 = vmatpush2.bf16.msra.mxu0 %v1215
  %1860 = vmatprep.subr.bf16.mxu0 %v1212
  %1861 = vmatpush2.bf16.msra.mxu0 %v1211
  %1862 = vmatprep.mubr.bf16.mxu0 %v62
  %1863 = vmatmul.mubr.bf16.gmra.mxu0 %v61
  %v1864 = vpop.f32.mrf.mxu0
  %v1865 = vadd.f32 %v1824, %v1864
  %v1866 = vpop.f32.mrf.mxu0
  %v1867 = vadd.f32 %v1826, %v1866
  %v1868 = vpop.f32.mrf.mxu0
  %v1869 = vpop.f32.mrf.mxu0
  %1870 = vdwg.mxu0
  %1871 = vmatprep.subr.bf16.mxu0 %v1272
  %1872 = vmatpush1.bf16.msra.mxu0 %v1271
  %1873 = vmatprep.subr.bf16.mxu0 %v1268
  %1874 = vmatpush1.bf16.msra.mxu0 %v1267
  %1875 = vmatprep.subr.bf16.mxu0 %v1264
  %1876 = vmatpush1.bf16.msra.mxu0 %v1263
  %1877 = vmatprep.subr.bf16.mxu0 %v1260
  %1878 = vmatpush1.bf16.msra.mxu0 %v1259
  %1879 = vmatprep.subr.bf16.mxu0 %v1256
  %1880 = vmatpush1.bf16.msra.mxu0 %v1255
  %1881 = vmatprep.subr.bf16.mxu0 %v1252
  %1882 = vmatpush1.bf16.msra.mxu0 %v1251
  %1883 = vmatprep.subr.bf16.mxu0 %v1248
  %1884 = vmatpush1.bf16.msra.mxu0 %v1247
  %1885 = vmatprep.subr.bf16.mxu0 %v1244
  %1886 = vmatpush1.bf16.msra.mxu0 %v1243
  %1887 = vmatprep.subr.bf16.mxu0 %v1304
  %1888 = vmatpush2.bf16.msra.mxu0 %v1303
  %1889 = vmatprep.subr.bf16.mxu0 %v1300
  %1890 = vmatpush2.bf16.msra.mxu0 %v1299
  %1891 = vmatprep.subr.bf16.mxu0 %v1296
  %1892 = vmatpush2.bf16.msra.mxu0 %v1295
  %1893 = vmatprep.subr.bf16.mxu0 %v1292
  %1894 = vmatpush2.bf16.msra.mxu0 %v1291
  %1895 = vmatprep.subr.bf16.mxu0 %v1288
  %1896 = vmatpush2.bf16.msra.mxu0 %v1287
  %1897 = vmatprep.subr.bf16.mxu0 %v1284
  %1898 = vmatpush2.bf16.msra.mxu0 %v1283
  %1899 = vmatprep.subr.bf16.mxu0 %v1280
  %1900 = vmatpush2.bf16.msra.mxu0 %v1279
  %1901 = vmatprep.subr.bf16.mxu0 %v1276
  %1902 = vmatpush2.bf16.msra.mxu0 %v1275
  %1903 = vmatprep.mubr.bf16.mxu0 %v64
  %1904 = vmatmul.mubr.bf16.gmra.mxu0 %v63
  %v1905 = vpop.f32.mrf.mxu0
  %v1906 = vadd.f32 %v1865, %v1905
  %v1907 = vpop.f32.mrf.mxu0
  %v1908 = vadd.f32 %v1867, %v1907
  %v1909 = vpop.f32.mrf.mxu0
  %v1910 = vpop.f32.mrf.mxu0
  %1911 = vdwg.mxu0
  %1912 = vmatprep.subr.bf16.mxu0 %v1336
  %1913 = vmatpush1.bf16.msra.mxu0 %v1335
  %1914 = vmatprep.subr.bf16.mxu0 %v1332
  %1915 = vmatpush1.bf16.msra.mxu0 %v1331
  %1916 = vmatprep.subr.bf16.mxu0 %v1328
  %1917 = vmatpush1.bf16.msra.mxu0 %v1327
  %1918 = vmatprep.subr.bf16.mxu0 %v1324
  %1919 = vmatpush1.bf16.msra.mxu0 %v1323
  %1920 = vmatprep.subr.bf16.mxu0 %v1320
  %1921 = vmatpush1.bf16.msra.mxu0 %v1319
  %1922 = vmatprep.subr.bf16.mxu0 %v1316
  %1923 = vmatpush1.bf16.msra.mxu0 %v1315
  %1924 = vmatprep.subr.bf16.mxu0 %v1312
  %1925 = vmatpush1.bf16.msra.mxu0 %v1311
  %1926 = vmatprep.subr.bf16.mxu0 %v1308
  %1927 = vmatpush1.bf16.msra.mxu0 %v1307
  %1928 = vmatprep.subr.bf16.mxu0 %v1368
  %1929 = vmatpush2.bf16.msra.mxu0 %v1367
  %1930 = vmatprep.subr.bf16.mxu0 %v1364
  %1931 = vmatpush2.bf16.msra.mxu0 %v1363
  %1932 = vmatprep.subr.bf16.mxu0 %v1360
  %1933 = vmatpush2.bf16.msra.mxu0 %v1359
  %1934 = vmatprep.subr.bf16.mxu0 %v1356
  %1935 = vmatpush2.bf16.msra.mxu0 %v1355
  %1936 = vmatprep.subr.bf16.mxu0 %v1352
  %1937 = vmatpush2.bf16.msra.mxu0 %v1351
  %1938 = vmatprep.subr.bf16.mxu0 %v1348
  %1939 = vmatpush2.bf16.msra.mxu0 %v1347
  %1940 = vmatprep.subr.bf16.mxu0 %v1344
  %1941 = vmatpush2.bf16.msra.mxu0 %v1343
  %1942 = vmatprep.subr.bf16.mxu0 %v1340
  %1943 = vmatpush2.bf16.msra.mxu0 %v1339
  %1944 = vmatprep.mubr.bf16.mxu0 %v66
  %1945 = vmatmul.mubr.bf16.gmra.mxu0 %v65
  %v1946 = vpop.f32.mrf.mxu0
  %v1947 = vadd.f32 %v1906, %v1946
  %v1948 = vpop.f32.mrf.mxu0
  %v1949 = vadd.f32 %v1908, %v1948
  %v1950 = vpop.f32.mrf.mxu0
  %v1951 = vpop.f32.mrf.mxu0
  %1952 = vdwg.mxu0
  %v1953 = vmax.f32 %v1783, 0.0
  %v1954 = vmax.f32 %v1785, 0.0
  %v1955 = vmax.f32 %v1947, 0.0
  %v1956 = vmax.f32 %v1949, 0.0
  %v1957 = vpack.c.bf16 %v1953, %v1953
  %v1958 = vpack.c.bf16 %v1954, %v1954
  %v1959 = vpack.c.bf16 %v1955, %v1955
  %v1960 = vpack.c.bf16 %v1956, %v1956
  %v1961 = vld [vmem:[%s3] sm:$0xff]
  %v1962 = vld [vmem:[%s3 + $0x8] sm:$0xff]
  %v1963 = vld [vmem:[%s3 + $0x10] sm:$0xff]
  %v1964 = vld [vmem:[%s3 + $0x18] sm:$0xff]
  %v1965 = vld [vmem:[%s3 + $0x20] sm:$0xff]
  %v1966 = vld [vmem:[%s3 + $0x28] sm:$0xff]
  %v1967 = vld [vmem:[%s3 + $0x30] sm:$0xff]
  %v1968 = vld [vmem:[%s3 + $0x38] sm:$0xff]
  %v1969 = vld [vmem:[%s3 + $0x40] sm:$0xff]
  %v1970 = vld [vmem:[%s3 + $0x48] sm:$0xff]
  %v1971 = vld [vmem:[%s3 + $0x50] sm:$0xff]
  %v1972 = vld [vmem:[%s3 + $0x58] sm:$0xff]
  %v1973 = vld [vmem:[%s3 + $0x60] sm:$0xff]
  %v1974 = vld [vmem:[%s3 + $0x68] sm:$0xff]
  %v1975 = vld [vmem:[%s3 + $0x70] sm:$0xff]
  %v1976 = vld [vmem:[%s3 + $0x78] sm:$0xff]
  %v1977 = vld [vmem:[%s3 + $0x80] sm:$0xff]
  %v1978 = vld [vmem:[%s3 + $0x88] sm:$0xff]
  %v1979 = vld [vmem:[%s3 + $0x90] sm:$0xff]
  %v1980 = vld [vmem:[%s3 + $0x98] sm:$0xff]
  %v1981 = vld [vmem:[%s3 + $0xa0] sm:$0xff]
  %v1982 = vld [vmem:[%s3 + $0xa8] sm:$0xff]
  %v1983 = vld [vmem:[%s3 + $0xb0] sm:$0xff]
  %v1984 = vld [vmem:[%s3 + $0xb8] sm:$0xff]
  %v1985 = vld [vmem:[%s3 + $0xc0] sm:$0xff]
  %v1986 = vld [vmem:[%s3 + $0xc8] sm:$0xff]
  %v1987 = vld [vmem:[%s3 + $0xd0] sm:$0xff]
  %v1988 = vld [vmem:[%s3 + $0xd8] sm:$0xff]
  %v1989 = vld [vmem:[%s3 + $0xe0] sm:$0xff]
  %v1990 = vld [vmem:[%s3 + $0xe8] sm:$0xff]
  %v1991 = vld [vmem:[%s3 + $0xf0] sm:$0xff]
  %v1992 = vld [vmem:[%s3 + $0xf8] sm:$0xff]
  %v1993 = vld [vmem:[%s3 + $0x100] sm:$0xff]
  %v1994 = vld [vmem:[%s3 + $0x108] sm:$0xff]
  %v1995 = vld [vmem:[%s3 + $0x110] sm:$0xff]
  %v1996 = vld [vmem:[%s3 + $0x118] sm:$0xff]
  %v1997 = vld [vmem:[%s3 + $0x120] sm:$0xff]
  %v1998 = vld [vmem:[%s3 + $0x128] sm:$0xff]
  %v1999 = vld [vmem:[%s3 + $0x130] sm:$0xff]
  %v2000 = vld [vmem:[%s3 + $0x138] sm:$0xff]
  %v2001 = vld [vmem:[%s3 + $0x140] sm:$0xff]
  %v2002 = vld [vmem:[%s3 + $0x148] sm:$0xff]
  %v2003 = vld [vmem:[%s3 + $0x150] sm:$0xff]
  %v2004 = vld [vmem:[%s3 + $0x158] sm:$0xff]
  %v2005 = vld [vmem:[%s3 + $0x160] sm:$0xff]
  %v2006 = vld [vmem:[%s3 + $0x168] sm:$0xff]
  %v2007 = vld [vmem:[%s3 + $0x170] sm:$0xff]
  %v2008 = vld [vmem:[%s3 + $0x178] sm:$0xff]
  %v2009 = vld [vmem:[%s3 + $0x180] sm:$0xff]
  %v2010 = vld [vmem:[%s3 + $0x188] sm:$0xff]
  %v2011 = vld [vmem:[%s3 + $0x190] sm:$0xff]
  %v2012 = vld [vmem:[%s3 + $0x198] sm:$0xff]
  %v2013 = vld [vmem:[%s3 + $0x1a0] sm:$0xff]
  %v2014 = vld [vmem:[%s3 + $0x1a8] sm:$0xff]
  %v2015 = vld [vmem:[%s3 + $0x1b0] sm:$0xff]
  %v2016 = vld [vmem:[%s3 + $0x1b8] sm:$0xff]
  %v2017 = vld [vmem:[%s3 + $0x1c0] sm:$0xff]
  %v2018 = vld [vmem:[%s3 + $0x1c8] sm:$0xff]
  %v2019 = vld [vmem:[%s3 + $0x1d0] sm:$0xff]
  %v2020 = vld [vmem:[%s3 + $0x1d8] sm:$0xff]
  %v2021 = vld [vmem:[%s3 + $0x1e0] sm:$0xff]
  %v2022 = vld [vmem:[%s3 + $0x1e8] sm:$0xff]
  %v2023 = vld [vmem:[%s3 + $0x1f0] sm:$0xff]
  %v2024 = vld [vmem:[%s3 + $0x1f8] sm:$0xff]
  %v2025 = vld [vmem:[%s4] sm:$0x3]
  %v2027 = vlaneseq
  %v2028 = vshrl.u32 %v2027, 7
  %v2029 = vsub.s32 0, %v2028
  %v2030 = vrot.slane %v2025, %v2029
  %v2031 = vlaneseq
  %v2032 = vshrl.u32 %v2031, 7
  %v2033 = vsub.s32 1, %v2032
  %v2034 = vrot.slane %v2025, %v2033
  %v2101 = vunpack.c.l.b16 %v1961
  %v2102 = vunpack.c.h.b16 %v1961
  %v2103 = vunpack.c.l.b16 %v1962
  %v2104 = vunpack.c.h.b16 %v1962
  %v2105 = vunpack.c.l.b16 %v1963
  %v2106 = vunpack.c.h.b16 %v1963
  %v2107 = vunpack.c.l.b16 %v1964
  %v2108 = vunpack.c.h.b16 %v1964
  %v2109 = vunpack.c.l.b16 %v1965
  %v2110 = vunpack.c.h.b16 %v1965
  %v2111 = vunpack.c.l.b16 %v1966
  %v2112 = vunpack.c.h.b16 %v1966
  %v2113 = vunpack.c.l.b16 %v1967
  %v2114 = vunpack.c.h.b16 %v1967
  %v2115 = vunpack.c.l.b16 %v1968
  %v2116 = vunpack.c.h.b16 %v1968
  %v2117 = vunpack.c.l.b16 %v1969
  %v2118 = vunpack.c.h.b16 %v1969
  %v2119 = vunpack.c.l.b16 %v1970
  %v2120 = vunpack.c.h.b16 %v1970
  %v2121 = vunpack.c.l.b16 %v1971
  %v2122 = vunpack.c.h.b16 %v1971
  %v2123 = vunpack.c.l.b16 %v1972
  %v2124 = vunpack.c.h.b16 %v1972
  %v2125 = vunpack.c.l.b16 %v1973
  %v2126 = vunpack.c.h.b16 %v1973
  %v2127 = vunpack.c.l.b16 %v1974
  %v2128 = vunpack.c.h.b16 %v1974
  %v2129 = vunpack.c.l.b16 %v1975
  %v2130 = vunpack.c.h.b16 %v1975
  %v2131 = vunpack.c.l.b16 %v1976
  %v2132 = vunpack.c.h.b16 %v1976
  %v2133 = vunpack.c.l.b16 %v1977
  %v2134 = vunpack.c.h.b16 %v1977
  %v2135 = vunpack.c.l.b16 %v1978
  %v2136 = vunpack.c.h.b16 %v1978
  %v2137 = vunpack.c.l.b16 %v1979
  %v2138 = vunpack.c.h.b16 %v1979
  %v2139 = vunpack.c.l.b16 %v1980
  %v2140 = vunpack.c.h.b16 %v1980
  %v2141 = vunpack.c.l.b16 %v1981
  %v2142 = vunpack.c.h.b16 %v1981
  %v2143 = vunpack.c.l.b16 %v1982
  %v2144 = vunpack.c.h.b16 %v1982
  %v2145 = vunpack.c.l.b16 %v1983
  %v2146 = vunpack.c.h.b16 %v1983
  %v2147 = vunpack.c.l.b16 %v1984
  %v2148 = vunpack.c.h.b16 %v1984
  %v2149 = vunpack.c.l.b16 %v1985
  %v2150 = vunpack.c.h.b16 %v1985
  %v2151 = vunpack.c.l.b16 %v1986
  %v2152 = vunpack.c.h.b16 %v1986
  %v2153 = vunpack.c.l.b16 %v1987
  %v2154 = vunpack.c.h.b16 %v1987
  %v2155 = vunpack.c.l.b16 %v1988
  %v2156 = vunpack.c.h.b16 %v1988
  %v2157 = vunpack.c.l.b16 %v1989
  %v2158 = vunpack.c.h.b16 %v1989
  %v2159 = vunpack.c.l.b16 %v1990
  %v2160 = vunpack.c.h.b16 %v1990
  %v2161 = vunpack.c.l.b16 %v1991
  %v2162 = vunpack.c.h.b16 %v1991
  %v2163 = vunpack.c.l.b16 %v1992
  %v2164 = vunpack.c.h.b16 %v1992
  %v2165 = vunpack.c.l.b16 %v1993
  %v2166 = vunpack.c.h.b16 %v1993
  %v2167 = vunpack.c.l.b16 %v1994
  %v2168 = vunpack.c.h.b16 %v1994
  %v2169 = vunpack.c.l.b16 %v1995
  %v2170 = vunpack.c.h.b16 %v1995
  %v2171 = vunpack.c.l.b16 %v1996
  %v2172 = vunpack.c.h.b16 %v1996
  %v2173 = vunpack.c.l.b16 %v1997
  %v2174 = vunpack.c.h.b16 %v1997
  %v2175 = vunpack.c.l.b16 %v1998
  %v2176 = vunpack.c.h.b16 %v1998
  %v2177 = vunpack.c.l.b16 %v1999
  %v2178 = vunpack.c.h.b16 %v1999
  %v2179 = vunpack.c.l.b16 %v2000
  %v2180 = vunpack.c.h.b16 %v2000
  %v2181 = vunpack.c.l.b16 %v2001
  %v2182 = vunpack.c.h.b16 %v2001
  %v2183 = vunpack.c.l.b16 %v2002
  %v2184 = vunpack.c.h.b16 %v2002
  %v2185 = vunpack.c.l.b16 %v2003
  %v2186 = vunpack.c.h.b16 %v2003
  %v2187 = vunpack.c.l.b16 %v2004
  %v2188 = vunpack.c.h.b16 %v2004
  %v2189 = vunpack.c.l.b16 %v2005
  %v2190 = vunpack.c.h.b16 %v2005
  %v2191 = vunpack.c.l.b16 %v2006
  %v2192 = vunpack.c.h.b16 %v2006
  %v2193 = vunpack.c.l.b16 %v2007
  %v2194 = vunpack.c.h.b16 %v2007
  %v2195 = vunpack.c.l.b16 %v2008
  %v2196 = vunpack.c.h.b16 %v2008
  %v2197 = vunpack.c.l.b16 %v2009
  %v2198 = vunpack.c.h.b16 %v2009
  %v2199 = vunpack.c.l.b16 %v2010
  %v2200 = vunpack.c.h.b16 %v2010
  %v2201 = vunpack.c.l.b16 %v2011
  %v2202 = vunpack.c.h.b16 %v2011
  %v2203 = vunpack.c.l.b16 %v2012
  %v2204 = vunpack.c.h.b16 %v2012
  %v2205 = vunpack.c.l.b16 %v2013
  %v2206 = vunpack.c.h.b16 %v2013
  %v2207 = vunpack.c.l.b16 %v2014
  %v2208 = vunpack.c.h.b16 %v2014
  %v2209 = vunpack.c.l.b16 %v2015
  %v2210 = vunpack.c.h.b16 %v2015
  %v2211 = vunpack.c.l.b16 %v2016
  %v2212 = vunpack.c.h.b16 %v2016
  %v2213 = vunpack.c.l.b16 %v2017
  %v2214 = vunpack.c.h.b16 %v2017
  %v2215 = vunpack.c.l.b16 %v2018
  %v2216 = vunpack.c.h.b16 %v2018
  %v2217 = vunpack.c.l.b16 %v2019
  %v2218 = vunpack.c.h.b16 %v2019
  %v2219 = vunpack.c.l.b16 %v2020
  %v2220 = vunpack.c.h.b16 %v2020
  %v2221 = vunpack.c.l.b16 %v2021
  %v2222 = vunpack.c.h.b16 %v2021
  %v2223 = vunpack.c.l.b16 %v2022
  %v2224 = vunpack.c.h.b16 %v2022
  %v2225 = vunpack.c.l.b16 %v2023
  %v2226 = vunpack.c.h.b16 %v2023
  %v2227 = vunpack.c.l.b16 %v2024
  %v2228 = vunpack.c.h.b16 %v2024
  %v2229 = vpack.c.b16 %v2103, %v2101
  %v2230 = vpack.c.b16 %v2104, %v2102
  %v2231 = vpack.c.b16 %v2107, %v2105
  %v2232 = vpack.c.b16 %v2108, %v2106
  %v2233 = vpack.c.b16 %v2111, %v2109
  %v2234 = vpack.c.b16 %v2112, %v2110
  %v2235 = vpack.c.b16 %v2115, %v2113
  %v2236 = vpack.c.b16 %v2116, %v2114
  %v2237 = vpack.c.b16 %v2119, %v2117
  %v2238 = vpack.c.b16 %v2120, %v2118
  %v2239 = vpack.c.b16 %v2123, %v2121
  %v2240 = vpack.c.b16 %v2124, %v2122
  %v2241 = vpack.c.b16 %v2127, %v2125
  %v2242 = vpack.c.b16 %v2128, %v2126
  %v2243 = vpack.c.b16 %v2131, %v2129
  %v2244 = vpack.c.b16 %v2132, %v2130
  %v2245 = vpack.c.b16 %v2135, %v2133
  %v2246 = vpack.c.b16 %v2136, %v2134
  %v2247 = vpack.c.b16 %v2139, %v2137
  %v2248 = vpack.c.b16 %v2140, %v2138
  %v2249 = vpack.c.b16 %v2143, %v2141
  %v2250 = vpack.c.b16 %v2144, %v2142
  %v2251 = vpack.c.b16 %v2147, %v2145
  %v2252 = vpack.c.b16 %v2148, %v2146
  %v2253 = vpack.c.b16 %v2151, %v2149
  %v2254 = vpack.c.b16 %v2152, %v2150
  %v2255 = vpack.c.b16 %v2155, %v2153
  %v2256 = vpack.c.b16 %v2156, %v2154
  %v2257 = vpack.c.b16 %v2159, %v2157
  %v2258 = vpack.c.b16 %v2160, %v2158
  %v2259 = vpack.c.b16 %v2163, %v2161
  %v2260 = vpack.c.b16 %v2164, %v2162
  %v2261 = vpack.c.b16 %v2167, %v2165
  %v2262 = vpack.c.b16 %v2168, %v2166
  %v2263 = vpack.c.b16 %v2171, %v2169
  %v2264 = vpack.c.b16 %v2172, %v2170
  %v2265 = vpack.c.b16 %v2175, %v2173
  %v2266 = vpack.c.b16 %v2176, %v2174
  %v2267 = vpack.c.b16 %v2179, %v2177
  %v2268 = vpack.c.b16 %v2180, %v2178
  %v2269 = vpack.c.b16 %v2183, %v2181
  %v2270 = vpack.c.b16 %v2184, %v2182
  %v2271 = vpack.c.b16 %v2187, %v2185
  %v2272 = vpack.c.b16 %v2188, %v2186
  %v2273 = vpack.c.b16 %v2191, %v2189
  %v2274 = vpack.c.b16 %v2192, %v2190
  %v2275 = vpack.c.b16 %v2195, %v2193
  %v2276 = vpack.c.b16 %v2196, %v2194
  %v2277 = vpack.c.b16 %v2199, %v2197
  %v2278 = vpack.c.b16 %v2200, %v2198
  %v2279 = vpack.c.b16 %v2203, %v2201
  %v2280 = vpack.c.b16 %v2204, %v2202
  %v2281 = vpack.c.b16 %v2207, %v2205
  %v2282 = vpack.c.b16 %v2208, %v2206
  %v2283 = vpack.c.b16 %v2211, %v2209
  %v2284 = vpack.c.b16 %v2212, %v2210
  %v2285 = vpack.c.b16 %v2215, %v2213
  %v2286 = vpack.c.b16 %v2216, %v2214
  %v2287 = vpack.c.b16 %v2219, %v2217
  %v2288 = vpack.c.b16 %v2220, %v2218
  %v2289 = vpack.c.b16 %v2223, %v2221
  %v2290 = vpack.c.b16 %v2224, %v2222
  %v2291 = vpack.c.b16 %v2227, %v2225
  %v2292 = vpack.c.b16 %v2228, %v2226
  %2357 = vmatprep.subr.bf16.mxu0 %v2244
  %2358 = vmatpush1.bf16.msra.mxu0 %v2243
  %2359 = vmatprep.subr.bf16.mxu0 %v2242
  %2360 = vmatpush1.bf16.msra.mxu0 %v2241
  %2361 = vmatprep.subr.bf16.mxu0 %v2240
  %2362 = vmatpush1.bf16.msra.mxu0 %v2239
  %2363 = vmatprep.subr.bf16.mxu0 %v2238
  %2364 = vmatpush1.bf16.msra.mxu0 %v2237
  %2365 = vmatprep.subr.bf16.mxu0 %v2236
  %2366 = vmatpush1.bf16.msra.mxu0 %v2235
  %2367 = vmatprep.subr.bf16.mxu0 %v2234
  %2368 = vmatpush1.bf16.msra.mxu0 %v2233
  %2369 = vmatprep.subr.bf16.mxu0 %v2232
  %2370 = vmatpush1.bf16.msra.mxu0 %v2231
  %2371 = vmatprep.subr.bf16.mxu0 %v2230
  %2372 = vmatpush1.bf16.msra.mxu0 %v2229
  %2373 = vmatprep.subr.bf16.mxu0 %v2260
  %2374 = vmatpush2.bf16.msra.mxu0 %v2259
  %2375 = vmatprep.subr.bf16.mxu0 %v2258
  %2376 = vmatpush2.bf16.msra.mxu0 %v2257
  %2377 = vmatprep.subr.bf16.mxu0 %v2256
  %2378 = vmatpush2.bf16.msra.mxu0 %v2255
  %2379 = vmatprep.subr.bf16.mxu0 %v2254
  %2380 = vmatpush2.bf16.msra.mxu0 %v2253
  %2381 = vmatprep.subr.bf16.mxu0 %v2252
  %2382 = vmatpush2.bf16.msra.mxu0 %v2251
  %2383 = vmatprep.subr.bf16.mxu0 %v2250
  %2384 = vmatpush2.bf16.msra.mxu0 %v2249
  %2385 = vmatprep.subr.bf16.mxu0 %v2248
  %2386 = vmatpush2.bf16.msra.mxu0 %v2247
  %2387 = vmatprep.subr.bf16.mxu0 %v2246
  %2388 = vmatpush2.bf16.msra.mxu0 %v2245
  %2389 = vmatprep.mubr.bf16.mxu0 %v1958
  %2390 = vmatmul.mubr.bf16.gmra.mxu0 %v1957
  %v2391 = vpop.f32.mrf.mxu0
  %v2392 = vadd.f32 %v2030, %v2391
  %v2393 = vpop.f32.mrf.mxu0
  %v2394 = vadd.f32 %v2034, %v2393
  %v2395 = vpop.f32.mrf.mxu0
  %v2396 = vpop.f32.mrf.mxu0
  %2397 = vdwg.mxu0
  %2398 = vmatprep.subr.bf16.mxu0 %v2276
  %2399 = vmatpush1.bf16.msra.mxu0 %v2275
  %2400 = vmatprep.subr.bf16.mxu0 %v2274
  %2401 = vmatpush1.bf16.msra.mxu0 %v2273
  %2402 = vmatprep.subr.bf16.mxu0 %v2272
  %2403 = vmatpush1.bf16.msra.mxu0 %v2271
  %2404 = vmatprep.subr.bf16.mxu0 %v2270
  %2405 = vmatpush1.bf16.msra.mxu0 %v2269
  %2406 = vmatprep.subr.bf16.mxu0 %v2268
  %2407 = vmatpush1.bf16.msra.mxu0 %v2267
  %2408 = vmatprep.subr.bf16.mxu0 %v2266
  %2409 = vmatpush1.bf16.msra.mxu0 %v2265
  %2410 = vmatprep.subr.bf16.mxu0 %v2264
  %2411 = vmatpush1.bf16.msra.mxu0 %v2263
  %2412 = vmatprep.subr.bf16.mxu0 %v2262
  %2413 = vmatpush1.bf16.msra.mxu0 %v2261
  %2414 = vmatprep.subr.bf16.mxu0 %v2292
  %2415 = vmatpush2.bf16.msra.mxu0 %v2291
  %2416 = vmatprep.subr.bf16.mxu0 %v2290
  %2417 = vmatpush2.bf16.msra.mxu0 %v2289
  %2418 = vmatprep.subr.bf16.mxu0 %v2288
  %2419 = vmatpush2.bf16.msra.mxu0 %v2287
  %2420 = vmatprep.subr.bf16.mxu0 %v2286
  %2421 = vmatpush2.bf16.msra.mxu0 %v2285
  %2422 = vmatprep.subr.bf16.mxu0 %v2284
  %2423 = vmatpush2.bf16.msra.mxu0 %v2283
  %2424 = vmatprep.subr.bf16.mxu0 %v2282
  %2425 = vmatpush2.bf16.msra.mxu0 %v2281
  %2426 = vmatprep.subr.bf16.mxu0 %v2280
  %2427 = vmatpush2.bf16.msra.mxu0 %v2279
  %2428 = vmatprep.subr.bf16.mxu0 %v2278
  %2429 = vmatpush2.bf16.msra.mxu0 %v2277
  %2430 = vmatprep.mubr.bf16.mxu0 %v1960
  %2431 = vmatmul.mubr.bf16.gmra.mxu0 %v1959
  %v2432 = vpop.f32.mrf.mxu0
  %v2433 = vadd.f32 %v2392, %v2432
  %v2434 = vpop.f32.mrf.mxu0
  %v2435 = vadd.f32 %v2394, %v2434
  %v2436 = vpop.f32.mrf.mxu0
  %v2437 = vpop.f32.mrf.mxu0
  %2438 = vdwg.mxu0
  %v2439 = vmax.f32 %v2433, 0.0
  %v2440 = vmax.f32 %v2435, 0.0
  %v2441 = vpack.c.bf16 %v2439, %v2439
  %v2442 = vpack.c.bf16 %v2440, %v2440
  %v2443 = vld [vmem:[%s5] sm:$0xf]
  %v2444 = vld [vmem:[%s5 + $0x4] sm:$0xf]
  %v2445 = vld [vmem:[%s5 + $0x8] sm:$0xf]
  %v2446 = vld [vmem:[%s5 + $0xc] sm:$0xf]
  %v2447 = vld [vmem:[%s5 + $0x10] sm:$0xf]
  %v2448 = vld [vmem:[%s5 + $0x14] sm:$0xf]
  %v2449 = vld [vmem:[%s5 + $0x18] sm:$0xf]
  %v2450 = vld [vmem:[%s5 + $0x1c] sm:$0xf]
  %v2451 = vld [vmem:[%s5 + $0x20] sm:$0xf]
  %v2452 = vld [vmem:[%s5 + $0x24] sm:$0xf]
  %v2453 = vld [vmem:[%s5 + $0x28] sm:$0xf]
  %v2454 = vld [vmem:[%s5 + $0x2c] sm:$0xf]
  %v2455 = vld [vmem:[%s5 + $0x30] sm:$0xf]
  %v2456 = vld [vmem:[%s5 + $0x34] sm:$0xf]
  %v2457 = vld [vmem:[%s5 + $0x38] sm:$0xf]
  %v2458 = vld [vmem:[%s5 + $0x3c] sm:$0xf]
  %v2459 = vld [vmem:[%s5 + $0x40] sm:$0xf]
  %v2460 = vld [vmem:[%s5 + $0x44] sm:$0xf]
  %v2461 = vld [vmem:[%s5 + $0x48] sm:$0xf]
  %v2462 = vld [vmem:[%s5 + $0x4c] sm:$0xf]
  %v2463 = vld [vmem:[%s5 + $0x50] sm:$0xf]
  %v2464 = vld [vmem:[%s5 + $0x54] sm:$0xf]
  %v2465 = vld [vmem:[%s5 + $0x58] sm:$0xf]
  %v2466 = vld [vmem:[%s5 + $0x5c] sm:$0xf]
  %v2467 = vld [vmem:[%s5 + $0x60] sm:$0xf]
  %v2468 = vld [vmem:[%s5 + $0x64] sm:$0xf]
  %v2469 = vld [vmem:[%s5 + $0x68] sm:$0xf]
  %v2470 = vld [vmem:[%s5 + $0x6c] sm:$0xf]
  %v2471 = vld [vmem:[%s5 + $0x70] sm:$0xf]
  %v2472 = vld [vmem:[%s5 + $0x74] sm:$0xf]
  %v2473 = vld [vmem:[%s5 + $0x78] sm:$0xf]
  %v2474 = vld [vmem:[%s5 + $0x7c] sm:$0xf]
  %v2475 = vld [vmem:[%s6] sm:$0x1]
  %v2477 = vlaneseq
  %v2478 = vshrl.u32 %v2477, 7
  %v2479 = vsub.s32 0, %v2478
  %v2480 = vrot.slane %v2475, %v2479
  %v2514 = vunpack.c.l.b16 %v2443
  %v2515 = vunpack.c.l.b16 %v2444
  %v2516 = vunpack.c.l.b16 %v2445
  %v2517 = vunpack.c.l.b16 %v2446
  %v2518 = vunpack.c.l.b16 %v2447
  %v2519 = vunpack.c.l.b16 %v2448
  %v2520 = vunpack.c.l.b16 %v2449
  %v2521 = vunpack.c.l.b16 %v2450
  %v2522 = vunpack.c.l.b16 %v2451
  %v2523 = vunpack.c.l.b16 %v2452
  %v2524 = vunpack.c.l.b16 %v2453
  %v2525 = vunpack.c.l.b16 %v2454
  %v2526 = vunpack.c.l.b16 %v2455
  %v2527 = vunpack.c.l.b16 %v2456
  %v2528 = vunpack.c.l.b16 %v2457
  %v2529 = vunpack.c.l.b16 %v2458
  %v2530 = vunpack.c.l.b16 %v2459
  %v2531 = vunpack.c.l.b16 %v2460
  %v2532 = vunpack.c.l.b16 %v2461
  %v2533 = vunpack.c.l.b16 %v2462
  %v2534 = vunpack.c.l.b16 %v2463
  %v2535 = vunpack.c.l.b16 %v2464
  %v2536 = vunpack.c.l.b16 %v2465
  %v2537 = vunpack.c.l.b16 %v2466
  %v2538 = vunpack.c.l.b16 %v2467
  %v2539 = vunpack.c.l.b16 %v2468
  %v2540 = vunpack.c.l.b16 %v2469
  %v2541 = vunpack.c.l.b16 %v2470
  %v2542 = vunpack.c.l.b16 %v2471
  %v2543 = vunpack.c.l.b16 %v2472
  %v2544 = vunpack.c.l.b16 %v2473
  %v2545 = vunpack.c.l.b16 %v2474
  %v2546 = vpack.c.b16 %v2515, %v2514
  %v2547 = vpack.c.b16 %v2517, %v2516
  %v2548 = vpack.c.b16 %v2519, %v2518
  %v2549 = vpack.c.b16 %v2521, %v2520
  %v2550 = vpack.c.b16 %v2523, %v2522
  %v2551 = vpack.c.b16 %v2525, %v2524
  %v2552 = vpack.c.b16 %v2527, %v2526
  %v2553 = vpack.c.b16 %v2529, %v2528
  %v2554 = vpack.c.b16 %v2531, %v2530
  %v2555 = vpack.c.b16 %v2533, %v2532
  %v2556 = vpack.c.b16 %v2535, %v2534
  %v2557 = vpack.c.b16 %v2537, %v2536
  %v2558 = vpack.c.b16 %v2539, %v2538
  %v2559 = vpack.c.b16 %v2541, %v2540
  %v2560 = vpack.c.b16 %v2543, %v2542
  %v2561 = vpack.c.b16 %v2545, %v2544
  %2578 = vmatprep.subr.bf16.mxu0 0
  %2579 = vmatpush1.bf16.msra.mxu0 %v2553
  %2580 = vmatprep.subr.bf16.mxu0 0
  %2581 = vmatpush1.bf16.msra.mxu0 %v2552
  %2582 = vmatprep.subr.bf16.mxu0 0
  %2583 = vmatpush1.bf16.msra.mxu0 %v2551
  %2584 = vmatprep.subr.bf16.mxu0 0
  %2585 = vmatpush1.bf16.msra.mxu0 %v2550
  %2586 = vmatprep.subr.bf16.mxu0 0
  %2587 = vmatpush1.bf16.msra.mxu0 %v2549
  %2588 = vmatprep.subr.bf16.mxu0 0
  %2589 = vmatpush1.bf16.msra.mxu0 %v2548
  %2590 = vmatprep.subr.bf16.mxu0 0
  %2591 = vmatpush1.bf16.msra.mxu0 %v2547
  %2592 = vmatprep.subr.bf16.mxu0 0
  %2593 = vmatpush1.bf16.msra.mxu0 %v2546
  %2594 = vmatprep.subr.bf16.mxu0 0
  %2595 = vmatpush2.bf16.msra.mxu0 %v2561
  %2596 = vmatprep.subr.bf16.mxu0 0
  %2597 = vmatpush2.bf16.msra.mxu0 %v2560
  %2598 = vmatprep.subr.bf16.mxu0 0
  %2599 = vmatpush2.bf16.msra.mxu0 %v2559
  %2600 = vmatprep.subr.bf16.mxu0 0
  %2601 = vmatpush2.bf16.msra.mxu0 %v2558
  %2602 = vmatprep.subr.bf16.mxu0 0
  %2603 = vmatpush2.bf16.msra.mxu0 %v2557
  %2604 = vmatprep.subr.bf16.mxu0 0
  %2605 = vmatpush2.bf16.msra.mxu0 %v2556
  %2606 = vmatprep.subr.bf16.mxu0 0
  %2607 = vmatpush2.bf16.msra.mxu0 %v2555
  %2608 = vmatprep.subr.bf16.mxu0 0
  %2609 = vmatpush2.bf16.msra.mxu0 %v2554
  %2610 = vmatprep.mubr.bf16.mxu0 %v2442
  %2611 = vmatmul.mubr.bf16.gmra.mxu0 %v2441
  %v2612 = vpop.f32.mrf.mxu0
  %v2613 = vadd.f32 %v2480, %v2612
  %v2614 = vpop.f32.mrf.mxu0
  %v2615 = vpop.f32.mrf.mxu0
  %v2616 = vpop.f32.mrf.mxu0
  %2617 = vdwg.mxu0
  %v2618 = vlaneseq
  %v2619 = vand.u32 %v2618, 127
  %vm2620 = vcmp.lt.s32.totalorder %v2619, 2
  %v2621 = vsel %vm2620, %v2613, -1e+30
  %2622 = vmax.xlane.f32.xlu0 %v2621
  %v2623 = vpop.xlane.xlu0 %2622
  %v2624 = vsub.f32 %v2621, %v2623
  %v2625 = vmul.f32 %v2624, 1.442695
  %v2626 = vpow.pop %v2625
  %2627 = vadd.xlane.f32.xlu0 %v2626
  %v2628 = vpop.xlane.xlu0 %2627
  %v2629 = vlog2.pop %v2628
  %v2630 = vmul.f32 %v2629, 0.6931472
  %v2631 = vadd.f32 %v2630, %v2623
  %v2632 = vsub.f32 %v2621, %v2631
  %2633 = vst [vmem:[%s7] sm:$0xff] %v2632
  // Predicated region
  $region30: #{mlp_forward.1} parent=0 // pred_check
    _
  $region31: #{mlp_forward.1} parent=0 // pred_check_branch
    %2635 = sbr.rel (0) target = $region33
  $region32: #{mlp_forward.1} parent=0 // pred_region
    _
  $region33: #{mlp_forward.1} parent=0 // pred_fallthru
    _
  // Predicated region
  $region34: #{mlp_forward.1} parent=0 // pred_check
    _
  $region35: #{mlp_forward.1} parent=0 // pred_check_branch
    %2637 = sbr.rel (0) target = $region37
  $region36: #{mlp_forward.1} parent=0 // pred_region
    _
  $region37: #{mlp_forward.1} parent=0 // pred_fallthru
    _

</llo_original>
